<compile_context>
chip_gen: v6e
topology: v6e:2x2x1
jax: 0.10.0
libtpu: 0.0.40
codegen_flags: <defaults>
</compile_context>

<pallas_src>
import functools

import jax
import jax.numpy as jnp
from jax.experimental import pallas as pl
from jax.experimental.pallas import tpu as pltpu

EPS = 1e-5                # torch.nn.LayerNorm default eps
NEG_INF = -1e10           # unavailable-action logit, as in the torch Categorical layer
TM_DEFAULT = 1024         # batch-tile rows (multiple of 128); safe on all TPU gens
MM_DTYPE = jnp.bfloat16   # dtype fed to the MXU (accumulation is always fp32)
VMEM_LIMIT_BYTES = 48 * 1024 * 1024  # > 32 MiB scoped default, < v7x's 64 MiB physical

_CONST_ORDER = ("e", "slot", "fng_o", "fnb_o", "fng_h", "fnb_h",
                "w1o", "w1h", "b1", "g1", "be1",
                "w2", "b2", "g2", "be2", "wa", "ba")


def _cdiv(a, b):
    return -(-a // b)


def _round_up(x, m):
    return _cdiv(x, m) * m


def _layernorm(x, gamma, beta):
    # biased variance over the last dim, identical to torch.nn.LayerNorm
    mu = jnp.mean(x, axis=-1, keepdims=True)
    var = jnp.mean((x - mu) * (x - mu), axis=-1, keepdims=True)
    return (x - mu) * jax.lax.rsqrt(var + EPS) * gamma + beta


def _oracle_kernel(obs_ref, acts_ref, *refs,
                   obs_dim, n_agents, n_actions, has_avail):
    """One batch tile: fused one-hot/concat -> MLPBase -> Categorical head (mode)."""
    if has_avail:
        avail_ref = refs[0]
        refs = refs[1:]
    (e_ref, slot_ref,
     fng_o_ref, fnb_o_ref, fng_h_ref, fnb_h_ref,
     w1o_ref, w1h_ref, b1_ref, g1_ref, be1_ref,
     w2_ref, b2_ref, g2_ref, be2_ref,
     wa_ref, ba_ref,
     act_out_ref, logp_out_ref) = refs

    a_dim = n_agents * n_actions
    d_in = obs_dim + a_dim

    obs = obs_ref[...].astype(jnp.float32)                 # accepts fp32 or bf16 obs

    # ---- fused one-hot(actions_all) built in VMEM (never written to HBM) -------
    # replicate each agent's action id across its n_actions slots with a tiny
    # fp32 dot against a constant 0/1 selector (each output is a single product,
    # so the values are integer-exact), then compare against the per-slot class
    # index with a +-0.5 tolerance.
    acts = acts_ref[...].astype(jnp.float32)               # (TM, n_agents)
    acts_rep = jnp.dot(acts, e_ref[...],
                       preferred_element_type=jnp.float32)            # (TM, a_dim)
    onehot = jnp.where(jnp.abs(acts_rep - slot_ref[...]) < 0.5, 1.0, 0.0)

    # ---- MLPBase.feature_norm: LayerNorm over the virtual concat [obs | onehot] -
    # one-hot block contributes exactly `n_agents` ones -> closed-form sums.
    mu = (jnp.sum(obs, axis=-1, keepdims=True) + n_agents) / d_in
    dobs = obs - mu
    var = (jnp.sum(dobs * dobs, axis=-1, keepdims=True)
           + n_agents * (1.0 - mu) * (1.0 - mu)
           + (a_dim - n_agents) * mu * mu) / d_in
    inv = jax.lax.rsqrt(var + EPS)
    obs_n = dobs * inv * fng_o_ref[...] + fnb_o_ref[...]
    oh_n = (onehot - mu) * inv * fng_h_ref[...] + fnb_h_ref[...]

    # ---- MLPLayer.fc1: Linear -> ReLU -> LayerNorm (matmul split obs / one-hot) -
    mm = w1o_ref.dtype
    z = (jnp.dot(obs_n.astype(mm), w1o_ref[...], preferred_element_type=jnp.float32)
         + jnp.dot(oh_n.astype(mm), w1h_ref[...], preferred_element_type=jnp.float32)
         + b1_ref[...])
    h = _layernorm(jnp.maximum(z, 0.0), g1_ref[...], be1_ref[...])

    # ---- MLPLayer.fc2[0] (layer_N = 1): Linear -> ReLU -> LayerNorm -------------
    z = jnp.dot(h.astype(mm), w2_ref[...],
                preferred_element_type=jnp.float32) + b2_ref[...]
    h = _layernorm(jnp.maximum(z, 0.0), g2_ref[...], be2_ref[...])

    # ---- ACTLayer Categorical head ----------------------------------------------
    logits = jnp.dot(h.astype(mm), wa_ref[...],
                     preferred_element_type=jnp.float32) + ba_ref[...]  # (TM, nA)
    if has_avail:
        logits = jnp.where(avail_ref[...] != 0, logits, NEG_INF)

    m = jnp.max(logits, axis=-1, keepdims=True)
    # deterministic mode: action = argmax(logits); log_prob = logits[argmax] - lse
    idx = jax.lax.broadcasted_iota(jnp.int32, logits.shape, 1).astype(jnp.float32)
    act_idx = jnp.min(jnp.where(logits == m, idx, float(n_actions)),
                      axis=-1, keepdims=True)
    logp = -jnp.log(jnp.sum(jnp.exp(logits - m), axis=-1, keepdims=True))

    # ---- lane-dense stores: pack (TM, 1) columns into (1, TM//128, 128) blocks --
    act_out_ref[...] = act_idx.astype(jnp.int32).reshape(act_out_ref.shape)
    logp_out_ref[...] = logp.reshape(logp_out_ref.shape)


def init_params(key, obs_dim, n_agents, n_actions, hidden):
    """Deterministic synthetic parameters (shapes match the torch module).

    Linear weights are stored [in, out] (transpose of nn.Linear.weight)."""
    d_in = obs_dim + n_agents * n_actions
    ks = jax.random.split(key, 3)
    p = {}
    p["fn_g"] = jnp.ones((1, d_in), jnp.float32)        # feature_norm LayerNorm
    p["fn_b"] = jnp.zeros((1, d_in), jnp.float32)
    p["w1"] = 0.1 * jax.random.normal(ks[0], (d_in, hidden), jnp.float32)
    p["b1"] = jnp.zeros((1, hidden), jnp.float32)
    p["ln1_g"] = jnp.ones((1, hidden), jnp.float32)
    p["ln1_b"] = jnp.zeros((1, hidden), jnp.float32)
    p["w2"] = 0.1 * jax.random.normal(ks[1], (hidden, hidden), jnp.float32)
    p["b2"] = jnp.zeros((1, hidden), jnp.float32)
    p["ln2_g"] = jnp.ones((1, hidden), jnp.float32)
    p["ln2_b"] = jnp.zeros((1, hidden), jnp.float32)
    p["w_act"] = 0.1 * jax.random.normal(ks[2], (hidden, n_actions), jnp.float32)
    p["b_act"] = jnp.zeros((1, n_actions), jnp.float32)
    return p


def prepare_params(params, obs_dim, n_agents, n_actions, mm_dtype=MM_DTYPE):
    """One-time parameter prep (hoisted out of the per-call path).

    Splits feature-norm / first-layer weights into obs vs. one-hot halves,
    pre-casts matmul weights to the MXU dtype and builds the tiny one-hot helper
    constants — so oracle_forward issues no wrapper-side cast/convert ops."""
    a_dim = n_agents * n_actions
    fn_g, fn_b, w1 = params["fn_g"], params["fn_b"], params["w1"]
    prep = dict(
        # E[a, a*n_actions : (a+1)*n_actions] = 1  -> acts @ E replicates action ids
        e=jnp.repeat(jnp.eye(n_agents, dtype=jnp.float32), n_actions, axis=1),
        slot=(jnp.arange(a_dim, dtype=jnp.int32) % n_actions
              ).astype(jnp.float32).reshape(1, a_dim),
        fng_o=fn_g[:, :obs_dim], fnb_o=fn_b[:, :obs_dim],
        fng_h=fn_g[:, obs_dim:], fnb_h=fn_b[:, obs_dim:],
        w1o=w1[:obs_dim].astype(mm_dtype), w1h=w1[obs_dim:].astype(mm_dtype),
        b1=params["b1"], g1=params["ln1_g"], be1=params["ln1_b"],
        w2=params["w2"].astype(mm_dtype), b2=params["b2"],
        g2=params["ln2_g"], be2=params["ln2_b"],
        wa=params["w_act"].astype(mm_dtype), ba=params["b_act"],
    )
    return {k: jnp.asarray(v) for k, v in prep.items()}


def oracle_forward(cent_obs, actions_all, rnn_states_oracle, masks, prep,
                   n_actions, available_actions_all=None, deterministic=True,
                   block_rows=TM_DEFAULT):
    """Equivalent of Oracle.forward for the 2-D (batch, dim) non-recurrent case.

    `prep` = prepare_params(...) output. cent_obs may be fp32 or bf16 (widened
    to fp32 in-kernel); available_actions_all may be any int/float dtype
    (tested `!= 0` in-kernel). Returns (actions int32 [B,1],
    action_log_probs fp32 [B,1], rnn_states_oracle passed through)."""
    # TODO(synk): stochastic Categorical sampling (deterministic=False), the GRU
    # RNNLayer branch (attack_use_recurrent / attack_use_naive_recurrent) and the
    # 3-D (T, B, ...) input case are not implemented; rnn_states pass through.
    assert deterministic, "only the deterministic (distribution-mode) path is fused"
    del masks  # unused in the non-recurrent configuration

    batch, obs_dim = cent_obs.shape
    n_agents = actions_all.shape[1]
    has_avail = available_actions_all is not None

    # ---- tile size: multiple of 128 (lane-dense packed outputs); aim for >= 2
    # grid steps so the "parallel" batch axis can occupy both v7x TensorCores.
    block_rows = max(128, (block_rows // 128) * 128)
    tm = min(block_rows, max(128, _round_up(_cdiv(batch, 2), 128)))

    # ---- ragged batches: no host-side jnp.pad of the (large) inputs. The grid is
    # cdiv(batch, tm); the last tile's out-of-bounds rows are undefined but every
    # row is processed independently and their outputs are sliced off below.
    # Only batches smaller than a single tile get a (negligible) pad.
    if batch < tm:
        pad = tm - batch
        cent_obs = jnp.pad(cent_obs, ((0, pad), (0, 0)))
        actions_all = jnp.pad(actions_all, ((0, pad), (0, 0)))
        if has_avail:
            available_actions_all = jnp.pad(available_actions_all,
                                            ((0, pad), (0, 0)), constant_values=1)
    n_blocks = _cdiv(batch, tm)
    rows_pad = n_blocks * tm

    # ---- specs: activation tiles stream over the batch grid; params stay
    # VMEM-resident (constant index maps -> DMA'd once).
    in_specs = [pl.BlockSpec((tm, obs_dim), lambda i: (i, 0)),
                pl.BlockSpec((tm, n_agents), lambda i: (i, 0))]
    inputs = [cent_obs, actions_all]
    if has_avail:
        in_specs.append(pl.BlockSpec((tm, n_actions), lambda i: (i, 0)))
        inputs.append(available_actions_all)

    const_list = [prep[k] for k in _CONST_ORDER]
    in_specs += [pl.BlockSpec(c.shape, lambda i: (0, 0)) for c in const_list]

    # lane-dense outputs: (tm, 1) per-row scalars are packed to (1, tm//128, 128)
    # blocks in-kernel so every output store is a full-lane unmasked vst.
    out_block = (1, tm // 128, 128)
    out_specs = [pl.BlockSpec(out_block, lambda i: (i, 0, 0)),
                 pl.BlockSpec(out_block, lambda i: (i, 0, 0))]
    out_shape = [jax.ShapeDtypeStruct((n_blocks, tm // 128, 128), jnp.int32),
                 jax.ShapeDtypeStruct((n_blocks, tm // 128, 128), jnp.float32)]

    kernel = functools.partial(_oracle_kernel, obs_dim=obs_dim,
                               n_agents=n_agents, n_actions=n_actions,
                               has_avail=has_avail)

    act_pack, logp_pack = pl.pallas_call(
        kernel,
        grid=(n_blocks,),
        in_specs=in_specs,
        out_specs=out_specs,
        out_shape=out_shape,
        compiler_params=pltpu.CompilerParams(
            dimension_semantics=("parallel",),
            vmem_limit_bytes=VMEM_LIMIT_BYTES),
    )(*inputs, *const_list)

    actions = act_pack.reshape(rows_pad)[:batch].reshape(batch, 1)
    logp = logp_pack.reshape(rows_pad)[:batch].reshape(batch, 1)
    return actions, logp, rnn_states_oracle.astype(jnp.float32)


if __name__ == "__main__":
    # Small, module-consistent shapes.
    batch = 8
    obs_dim = 20
    n_agents = 3
    n_actions = 5
    hidden = 32
    recurrent_N = 1

    keys = jax.random.split(jax.random.PRNGKey(0), 8)
    cent_obs = jax.random.normal(keys[0], (batch, obs_dim), jnp.float32)
    actions_all = jax.random.randint(keys[1], (batch, n_agents), 0, n_actions)
    rnn_states = jnp.zeros((batch, recurrent_N, hidden), jnp.float32)
    masks = jnp.ones((batch, 1), jnp.float32)

    params = init_params(keys[2], obs_dim, n_agents, n_actions, hidden)
    prep = prepare_params(params, obs_dim, n_agents, n_actions)   # one-time prep

    actions, action_log_probs, rnn_states_out = oracle_forward(
        cent_obs, actions_all, rnn_states, masks, prep, n_actions,
        available_actions_all=None, deterministic=True)
    jax.block_until_ready((actions, action_log_probs, rnn_states_out))

    assert actions.shape == (batch, 1) and actions.dtype == jnp.int32
    assert action_log_probs.shape == (batch, 1) and action_log_probs.dtype == jnp.float32
    assert rnn_states_out.shape == rnn_states.shape
    assert bool(jnp.all(actions >= 0)) and bool(jnp.all(actions < n_actions))
    assert bool(jnp.all(action_log_probs <= 0.0))

    # Multi-tile, non-tile-aligned batch (no host padding) + available-actions mask.
    batch2 = 300
    cent_obs2 = jax.random.normal(keys[3], (batch2, obs_dim), jnp.float32)
    actions_all2 = jax.random.randint(keys[4], (batch2, n_agents), 0, n_actions)
    avail2 = jax.random.randint(keys[5], (batch2, n_actions), 0, 2).astype(jnp.int32)
    avail2 = avail2.at[:, 0].set(1)          # at least one available action per row
    rnn_states2 = jnp.zeros((batch2, recurrent_N, hidden), jnp.float32)
    masks2 = jnp.ones((batch2, 1), jnp.float32)

    a2, lp2, _ = oracle_forward(cent_obs2, actions_all2, rnn_states2, masks2, prep,
                                n_actions, available_actions_all=avail2,
                                deterministic=True, block_rows=128)
    jax.block_until_ready((a2, lp2))
    assert a2.shape == (batch2, 1) and lp2.shape == (batch2, 1)
    assert bool(jnp.all(a2 >= 0)) and bool(jnp.all(a2 < n_actions))
    assert bool(jnp.all(lp2 <= 0.0))
    # chosen actions must be available under the mask
    chosen_avail = jnp.take_along_axis(avail2, a2, axis=1)
    assert bool(jnp.all(chosen_avail == 1))

    print("KERNEL_OK")
</pallas_src>

<mosaic_0001>
module attributes {stable_mosaic.version = 11 : i64} {
  func.func @_oracle_kernel(%arg0: i32, %arg1: memref<128x20xf32, #tpu.memory_space<vmem>>, %arg2: memref<128x3xi32, #tpu.memory_space<vmem>>, %arg3: memref<3x15xf32, #tpu.memory_space<vmem>>, %arg4: memref<1x15xf32, #tpu.memory_space<vmem>>, %arg5: memref<1x20xf32, #tpu.memory_space<vmem>>, %arg6: memref<1x20xf32, #tpu.memory_space<vmem>>, %arg7: memref<1x15xf32, #tpu.memory_space<vmem>>, %arg8: memref<1x15xf32, #tpu.memory_space<vmem>>, %arg9: memref<20x32xbf16, #tpu.memory_space<vmem>>, %arg10: memref<15x32xbf16, #tpu.memory_space<vmem>>, %arg11: memref<1x32xf32, #tpu.memory_space<vmem>>, %arg12: memref<1x32xf32, #tpu.memory_space<vmem>>, %arg13: memref<1x32xf32, #tpu.memory_space<vmem>>, %arg14: memref<32x32xbf16, #tpu.memory_space<vmem>>, %arg15: memref<1x32xf32, #tpu.memory_space<vmem>>, %arg16: memref<1x32xf32, #tpu.memory_space<vmem>>, %arg17: memref<1x32xf32, #tpu.memory_space<vmem>>, %arg18: memref<32x5xbf16, #tpu.memory_space<vmem>>, %arg19: memref<1x5xf32, #tpu.memory_space<vmem>>, %arg20: memref<1x1x128xi32, #tpu.memory_space<vmem>>, %arg21: memref<1x1x128xf32, #tpu.memory_space<vmem>>) attributes {dimension_semantics = [#tpu.dimension_semantics<parallel>], iteration_bounds = array<i64: 1>, scalar_prefetch = 0 : i64, scratch_operands = 0 : i64, tpu.core_type = #tpu.core_type<tc>, window_params = [{transform_indices = @transform_0, window_bounds = array<i64: 128, 20>}, {transform_indices = @transform_1, window_bounds = array<i64: 128, 3>}, {pipeline_mode = #tpu.pipeline_mode<synchronous>, transform_indices = @transform_2, window_bounds = array<i64: 3, 15>}, {pipeline_mode = #tpu.pipeline_mode<synchronous>, transform_indices = @transform_3, window_bounds = array<i64: 1, 15>}, {pipeline_mode = #tpu.pipeline_mode<synchronous>, transform_indices = @transform_4, window_bounds = array<i64: 1, 20>}, {pipeline_mode = #tpu.pipeline_mode<synchronous>, transform_indices = @transform_5, window_bounds = array<i64: 1, 20>}, {pipeline_mode = #tpu.pipeline_mode<synchronous>, transform_indices = @transform_6, window_bounds = array<i64: 1, 15>}, {pipeline_mode = #tpu.pipeline_mode<synchronous>, transform_indices = @transform_7, window_bounds = array<i64: 1, 15>}, {pipeline_mode = #tpu.pipeline_mode<synchronous>, transform_indices = @transform_8, window_bounds = array<i64: 20, 32>}, {pipeline_mode = #tpu.pipeline_mode<synchronous>, transform_indices = @transform_9, window_bounds = array<i64: 15, 32>}, {pipeline_mode = #tpu.pipeline_mode<synchronous>, transform_indices = @transform_10, window_bounds = array<i64: 1, 32>}, {pipeline_mode = #tpu.pipeline_mode<synchronous>, transform_indices = @transform_11, window_bounds = array<i64: 1, 32>}, {pipeline_mode = #tpu.pipeline_mode<synchronous>, transform_indices = @transform_12, window_bounds = array<i64: 1, 32>}, {pipeline_mode = #tpu.pipeline_mode<synchronous>, transform_indices = @transform_13, window_bounds = array<i64: 32, 32>}, {pipeline_mode = #tpu.pipeline_mode<synchronous>, transform_indices = @transform_14, window_bounds = array<i64: 1, 32>}, {pipeline_mode = #tpu.pipeline_mode<synchronous>, transform_indices = @transform_15, window_bounds = array<i64: 1, 32>}, {pipeline_mode = #tpu.pipeline_mode<synchronous>, transform_indices = @transform_16, window_bounds = array<i64: 1, 32>}, {pipeline_mode = #tpu.pipeline_mode<synchronous>, transform_indices = @transform_17, window_bounds = array<i64: 32, 5>}, {pipeline_mode = #tpu.pipeline_mode<synchronous>, transform_indices = @transform_18, window_bounds = array<i64: 1, 5>}, {transform_indices = @transform_19, window_bounds = array<i64: 1, 1, 128>}, {transform_indices = @transform_20, window_bounds = array<i64: 1, 1, 128>}]} {
    %c0 = arith.constant 0 : index
    %c0_0 = arith.constant 0 : index
    %0 = vector.load %arg1[%c0, %c0_0] : memref<128x20xf32, #tpu.memory_space<vmem>>, vector<128x20xf32>
    %c0_1 = arith.constant 0 : index
    %c0_2 = arith.constant 0 : index
    %1 = vector.load %arg2[%c0_1, %c0_2] : memref<128x3xi32, #tpu.memory_space<vmem>>, vector<128x3xi32>
    %2 = arith.sitofp %1 : vector<128x3xi32> to vector<128x3xf32>
    %c0_3 = arith.constant 0 : index
    %c0_4 = arith.constant 0 : index
    %3 = vector.load %arg3[%c0_3, %c0_4] : memref<3x15xf32, #tpu.memory_space<vmem>>, vector<3x15xf32>
    %cst = arith.constant dense<0.000000e+00> : vector<128x15xf32>
    %4 = tpu.matmul %2, %3, %cst {dimension_numbers = #tpu.dot_dimension_numbers<[1], [0], [0], [1], [0, 0, 1, 1], [], []>} : vector<128x3xf32>, vector<3x15xf32>, vector<128x15xf32> -> vector<128x15xf32>
    %c0_5 = arith.constant 0 : index
    %c0_6 = arith.constant 0 : index
    %5 = vector.load %arg4[%c0_5, %c0_6] : memref<1x15xf32, #tpu.memory_space<vmem>>, vector<1x15xf32>
    %6 = vector.broadcast %5 : vector<1x15xf32> to vector<128x15xf32>
    %7 = arith.subf %4, %6 : vector<128x15xf32>
    %8 = math.absf %7 : vector<128x15xf32>
    %cst_7 = arith.constant 5.000000e-01 : f32
    %9 = vector.broadcast %cst_7 : f32 to vector<128x15xf32>
    %10 = arith.cmpf olt, %8, %9 : vector<128x15xf32>
    %cst_8 = arith.constant 1.000000e+00 : f32
    %cst_9 = arith.constant 0.000000e+00 : f32
    %11 = vector.broadcast %cst_8 : f32 to vector<128x15xf32>
    %12 = vector.broadcast %cst_9 : f32 to vector<128x15xf32>
    %13 = arith.select %10, %11, %12 : vector<128x15xi1>, vector<128x15xf32>
    %cst_10 = arith.constant dense<0.000000e+00> : vector<128xf32>
    %14 = vector.multi_reduction <add>, %0, %cst_10 [1] : vector<128x20xf32> to vector<128xf32>
    %15 = vector.shape_cast %14 : vector<128xf32> to vector<128x1xf32>
    %cst_11 = arith.constant 3.000000e+00 : f32
    %16 = vector.broadcast %cst_11 : f32 to vector<128x1xf32>
    %17 = arith.addf %15, %16 : vector<128x1xf32>
    %cst_12 = arith.constant 3.500000e+01 : f32
    %18 = vector.broadcast %cst_12 : f32 to vector<128x1xf32>
    %19 = arith.divf %17, %18 : vector<128x1xf32>
    %20 = vector.broadcast %19 : vector<128x1xf32> to vector<128x20xf32>
    %21 = arith.subf %0, %20 : vector<128x20xf32>
    %22 = arith.mulf %21, %21 : vector<128x20xf32>
    %cst_13 = arith.constant dense<0.000000e+00> : vector<128xf32>
    %23 = vector.multi_reduction <add>, %22, %cst_13 [1] : vector<128x20xf32> to vector<128xf32>
    %24 = vector.shape_cast %23 : vector<128xf32> to vector<128x1xf32>
    %cst_14 = arith.constant 1.000000e+00 : f32
    %25 = vector.broadcast %cst_14 : f32 to vector<128x1xf32>
    %26 = arith.subf %25, %19 : vector<128x1xf32>
    %cst_15 = arith.constant 3.000000e+00 : f32
    %27 = vector.broadcast %cst_15 : f32 to vector<128x1xf32>
    %28 = arith.mulf %27, %26 : vector<128x1xf32>
    %cst_16 = arith.constant 1.000000e+00 : f32
    %29 = vector.broadcast %cst_16 : f32 to vector<128x1xf32>
    %30 = arith.subf %29, %19 : vector<128x1xf32>
    %31 = arith.mulf %28, %30 : vector<128x1xf32>
    %32 = arith.addf %24, %31 : vector<128x1xf32>
    %cst_17 = arith.constant 1.200000e+01 : f32
    %33 = vector.broadcast %cst_17 : f32 to vector<128x1xf32>
    %34 = arith.mulf %33, %19 : vector<128x1xf32>
    %35 = arith.mulf %34, %19 : vector<128x1xf32>
    %36 = arith.addf %32, %35 : vector<128x1xf32>
    %cst_18 = arith.constant 3.500000e+01 : f32
    %37 = vector.broadcast %cst_18 : f32 to vector<128x1xf32>
    %38 = arith.divf %36, %37 : vector<128x1xf32>
    %cst_19 = arith.constant 9.99999974E-6 : f32
    %39 = vector.broadcast %cst_19 : f32 to vector<128x1xf32>
    %40 = arith.addf %38, %39 : vector<128x1xf32>
    %41 = math.rsqrt %40 : vector<128x1xf32>
    %42 = vector.broadcast %41 : vector<128x1xf32> to vector<128x20xf32>
    %43 = arith.mulf %21, %42 : vector<128x20xf32>
    %c0_20 = arith.constant 0 : index
    %c0_21 = arith.constant 0 : index
    %44 = vector.load %arg5[%c0_20, %c0_21] : memref<1x20xf32, #tpu.memory_space<vmem>>, vector<1x20xf32>
    %45 = vector.broadcast %44 : vector<1x20xf32> to vector<128x20xf32>
    %46 = arith.mulf %43, %45 : vector<128x20xf32>
    %c0_22 = arith.constant 0 : index
    %c0_23 = arith.constant 0 : index
    %47 = vector.load %arg6[%c0_22, %c0_23] : memref<1x20xf32, #tpu.memory_space<vmem>>, vector<1x20xf32>
    %48 = vector.broadcast %47 : vector<1x20xf32> to vector<128x20xf32>
    %49 = arith.addf %46, %48 : vector<128x20xf32>
    %50 = vector.broadcast %19 : vector<128x1xf32> to vector<128x15xf32>
    %51 = arith.subf %13, %50 : vector<128x15xf32>
    %52 = vector.broadcast %41 : vector<128x1xf32> to vector<128x15xf32>
    %53 = arith.mulf %51, %52 : vector<128x15xf32>
    %c0_24 = arith.constant 0 : index
    %c0_25 = arith.constant 0 : index
    %54 = vector.load %arg7[%c0_24, %c0_25] : memref<1x15xf32, #tpu.memory_space<vmem>>, vector<1x15xf32>
    %55 = vector.broadcast %54 : vector<1x15xf32> to vector<128x15xf32>
    %56 = arith.mulf %53, %55 : vector<128x15xf32>
    %c0_26 = arith.constant 0 : index
    %c0_27 = arith.constant 0 : index
    %57 = vector.load %arg8[%c0_26, %c0_27] : memref<1x15xf32, #tpu.memory_space<vmem>>, vector<1x15xf32>
    %58 = vector.broadcast %57 : vector<1x15xf32> to vector<128x15xf32>
    %59 = arith.addf %56, %58 : vector<128x15xf32>
    %60 = arith.truncf %49 : vector<128x20xf32> to vector<128x20xbf16>
    %c0_28 = arith.constant 0 : index
    %c0_29 = arith.constant 0 : index
    %61 = vector.load %arg9[%c0_28, %c0_29] : memref<20x32xbf16, #tpu.memory_space<vmem>>, vector<20x32xbf16>
    %cst_30 = arith.constant dense<0.000000e+00> : vector<128x32xf32>
    %62 = tpu.matmul %60, %61, %cst_30 {dimension_numbers = #tpu.dot_dimension_numbers<[1], [0], [0], [1], [0, 0, 1, 1], [], []>} : vector<128x20xbf16>, vector<20x32xbf16>, vector<128x32xf32> -> vector<128x32xf32>
    %63 = arith.truncf %59 : vector<128x15xf32> to vector<128x15xbf16>
    %c0_31 = arith.constant 0 : index
    %c0_32 = arith.constant 0 : index
    %64 = vector.load %arg10[%c0_31, %c0_32] : memref<15x32xbf16, #tpu.memory_space<vmem>>, vector<15x32xbf16>
    %cst_33 = arith.constant dense<0.000000e+00> : vector<128x32xf32>
    %65 = tpu.matmul %63, %64, %cst_33 {dimension_numbers = #tpu.dot_dimension_numbers<[1], [0], [0], [1], [0, 0, 1, 1], [], []>} : vector<128x15xbf16>, vector<15x32xbf16>, vector<128x32xf32> -> vector<128x32xf32>
    %66 = arith.addf %62, %65 : vector<128x32xf32>
    %c0_34 = arith.constant 0 : index
    %c0_35 = arith.constant 0 : index
    %67 = vector.load %arg11[%c0_34, %c0_35] : memref<1x32xf32, #tpu.memory_space<vmem>>, vector<1x32xf32>
    %68 = vector.broadcast %67 : vector<1x32xf32> to vector<128x32xf32>
    %69 = arith.addf %66, %68 : vector<128x32xf32>
    %cst_36 = arith.constant 0.000000e+00 : f32
    %70 = vector.broadcast %cst_36 : f32 to vector<128x32xf32>
    %71 = arith.maximumf %69, %70 : vector<128x32xf32>
    %c0_37 = arith.constant 0 : index
    %c0_38 = arith.constant 0 : index
    %72 = vector.load %arg12[%c0_37, %c0_38] : memref<1x32xf32, #tpu.memory_space<vmem>>, vector<1x32xf32>
    %c0_39 = arith.constant 0 : index
    %c0_40 = arith.constant 0 : index
    %73 = vector.load %arg13[%c0_39, %c0_40] : memref<1x32xf32, #tpu.memory_space<vmem>>, vector<1x32xf32>
    %cst_41 = arith.constant dense<0.000000e+00> : vector<128xf32>
    %74 = vector.multi_reduction <add>, %71, %cst_41 [1] : vector<128x32xf32> to vector<128xf32>
    %75 = vector.shape_cast %74 : vector<128xf32> to vector<128x1xf32>
    %cst_42 = arith.constant 3.200000e+01 : f32
    %76 = vector.broadcast %cst_42 : f32 to vector<128x1xf32>
    %77 = arith.divf %75, %76 : vector<128x1xf32>
    %78 = vector.broadcast %77 : vector<128x1xf32> to vector<128x32xf32>
    %79 = arith.subf %71, %78 : vector<128x32xf32>
    %80 = vector.broadcast %77 : vector<128x1xf32> to vector<128x32xf32>
    %81 = arith.subf %71, %80 : vector<128x32xf32>
    %82 = arith.mulf %79, %81 : vector<128x32xf32>
    %cst_43 = arith.constant dense<0.000000e+00> : vector<128xf32>
    %83 = vector.multi_reduction <add>, %82, %cst_43 [1] : vector<128x32xf32> to vector<128xf32>
    %84 = vector.shape_cast %83 : vector<128xf32> to vector<128x1xf32>
    %cst_44 = arith.constant 3.200000e+01 : f32
    %85 = vector.broadcast %cst_44 : f32 to vector<128x1xf32>
    %86 = arith.divf %84, %85 : vector<128x1xf32>
    %87 = vector.broadcast %77 : vector<128x1xf32> to vector<128x32xf32>
    %88 = arith.subf %71, %87 : vector<128x32xf32>
    %cst_45 = arith.constant 9.99999974E-6 : f32
    %89 = vector.broadcast %cst_45 : f32 to vector<128x1xf32>
    %90 = arith.addf %86, %89 : vector<128x1xf32>
    %91 = math.rsqrt %90 : vector<128x1xf32>
    %92 = vector.broadcast %91 : vector<128x1xf32> to vector<128x32xf32>
    %93 = arith.mulf %88, %92 : vector<128x32xf32>
    %94 = vector.broadcast %72 : vector<1x32xf32> to vector<128x32xf32>
    %95 = arith.mulf %93, %94 : vector<128x32xf32>
    %96 = vector.broadcast %73 : vector<1x32xf32> to vector<128x32xf32>
    %97 = arith.addf %95, %96 : vector<128x32xf32>
    %98 = arith.truncf %97 : vector<128x32xf32> to vector<128x32xbf16>
    %c0_46 = arith.constant 0 : index
    %c0_47 = arith.constant 0 : index
    %99 = vector.load %arg14[%c0_46, %c0_47] : memref<32x32xbf16, #tpu.memory_space<vmem>>, vector<32x32xbf16>
    %cst_48 = arith.constant dense<0.000000e+00> : vector<128x32xf32>
    %100 = tpu.matmul %98, %99, %cst_48 {dimension_numbers = #tpu.dot_dimension_numbers<[1], [0], [0], [1], [0, 0, 1, 1], [], []>} : vector<128x32xbf16>, vector<32x32xbf16>, vector<128x32xf32> -> vector<128x32xf32>
    %c0_49 = arith.constant 0 : index
    %c0_50 = arith.constant 0 : index
    %101 = vector.load %arg15[%c0_49, %c0_50] : memref<1x32xf32, #tpu.memory_space<vmem>>, vector<1x32xf32>
    %102 = vector.broadcast %101 : vector<1x32xf32> to vector<128x32xf32>
    %103 = arith.addf %100, %102 : vector<128x32xf32>
    %cst_51 = arith.constant 0.000000e+00 : f32
    %104 = vector.broadcast %cst_51 : f32 to vector<128x32xf32>
    %105 = arith.maximumf %103, %104 : vector<128x32xf32>
    %c0_52 = arith.constant 0 : index
    %c0_53 = arith.constant 0 : index
    %106 = vector.load %arg16[%c0_52, %c0_53] : memref<1x32xf32, #tpu.memory_space<vmem>>, vector<1x32xf32>
    %c0_54 = arith.constant 0 : index
    %c0_55 = arith.constant 0 : index
    %107 = vector.load %arg17[%c0_54, %c0_55] : memref<1x32xf32, #tpu.memory_space<vmem>>, vector<1x32xf32>
    %cst_56 = arith.constant dense<0.000000e+00> : vector<128xf32>
    %108 = vector.multi_reduction <add>, %105, %cst_56 [1] : vector<128x32xf32> to vector<128xf32>
    %109 = vector.shape_cast %108 : vector<128xf32> to vector<128x1xf32>
    %cst_57 = arith.constant 3.200000e+01 : f32
    %110 = vector.broadcast %cst_57 : f32 to vector<128x1xf32>
    %111 = arith.divf %109, %110 : vector<128x1xf32>
    %112 = vector.broadcast %111 : vector<128x1xf32> to vector<128x32xf32>
    %113 = arith.subf %105, %112 : vector<128x32xf32>
    %114 = vector.broadcast %111 : vector<128x1xf32> to vector<128x32xf32>
    %115 = arith.subf %105, %114 : vector<128x32xf32>
    %116 = arith.mulf %113, %115 : vector<128x32xf32>
    %cst_58 = arith.constant dense<0.000000e+00> : vector<128xf32>
    %117 = vector.multi_reduction <add>, %116, %cst_58 [1] : vector<128x32xf32> to vector<128xf32>
    %118 = vector.shape_cast %117 : vector<128xf32> to vector<128x1xf32>
    %cst_59 = arith.constant 3.200000e+01 : f32
    %119 = vector.broadcast %cst_59 : f32 to vector<128x1xf32>
    %120 = arith.divf %118, %119 : vector<128x1xf32>
    %121 = vector.broadcast %111 : vector<128x1xf32> to vector<128x32xf32>
    %122 = arith.subf %105, %121 : vector<128x32xf32>
    %cst_60 = arith.constant 9.99999974E-6 : f32
    %123 = vector.broadcast %cst_60 : f32 to vector<128x1xf32>
    %124 = arith.addf %120, %123 : vector<128x1xf32>
    %125 = math.rsqrt %124 : vector<128x1xf32>
    %126 = vector.broadcast %125 : vector<128x1xf32> to vector<128x32xf32>
    %127 = arith.mulf %122, %126 : vector<128x32xf32>
    %128 = vector.broadcast %106 : vector<1x32xf32> to vector<128x32xf32>
    %129 = arith.mulf %127, %128 : vector<128x32xf32>
    %130 = vector.broadcast %107 : vector<1x32xf32> to vector<128x32xf32>
    %131 = arith.addf %129, %130 : vector<128x32xf32>
    %132 = arith.truncf %131 : vector<128x32xf32> to vector<128x32xbf16>
    %c0_61 = arith.constant 0 : index
    %c0_62 = arith.constant 0 : index
    %133 = vector.load %arg18[%c0_61, %c0_62] : memref<32x5xbf16, #tpu.memory_space<vmem>>, vector<32x5xbf16>
    %cst_63 = arith.constant dense<0.000000e+00> : vector<128x5xf32>
    %134 = tpu.matmul %132, %133, %cst_63 {dimension_numbers = #tpu.dot_dimension_numbers<[1], [0], [0], [1], [0, 0, 1, 1], [], []>} : vector<128x32xbf16>, vector<32x5xbf16>, vector<128x5xf32> -> vector<128x5xf32>
    %c0_64 = arith.constant 0 : index
    %c0_65 = arith.constant 0 : index
    %135 = vector.load %arg19[%c0_64, %c0_65] : memref<1x5xf32, #tpu.memory_space<vmem>>, vector<1x5xf32>
    %136 = vector.broadcast %135 : vector<1x5xf32> to vector<128x5xf32>
    %137 = arith.addf %134, %136 : vector<128x5xf32>
    %cst_66 = arith.constant dense<0xFF800000> : vector<128xf32>
    %138 = vector.multi_reduction <maximumf>, %137, %cst_66 [1] : vector<128x5xf32> to vector<128xf32>
    %139 = vector.shape_cast %138 : vector<128xf32> to vector<128x1xf32>
    %140 = tpu.iota {dimensions = array<i32: 1>} : vector<128x5xi32>
    %141 = arith.sitofp %140 : vector<128x5xi32> to vector<128x5xf32>
    %142 = vector.broadcast %139 : vector<128x1xf32> to vector<128x5xf32>
    %143 = arith.cmpf oeq, %137, %142 : vector<128x5xf32>
    %cst_67 = arith.constant 5.000000e+00 : f32
    %144 = vector.broadcast %cst_67 : f32 to vector<128x5xf32>
    %145 = arith.select %143, %141, %144 : vector<128x5xi1>, vector<128x5xf32>
    %cst_68 = arith.constant dense<0x7F800000> : vector<128xf32>
    %146 = vector.multi_reduction <minimumf>, %145, %cst_68 [1] : vector<128x5xf32> to vector<128xf32>
    %147 = vector.shape_cast %146 : vector<128xf32> to vector<128x1xf32>
    %148 = vector.broadcast %139 : vector<128x1xf32> to vector<128x5xf32>
    %149 = arith.subf %137, %148 : vector<128x5xf32>
    %150 = math.exp %149 : vector<128x5xf32>
    %cst_69 = arith.constant dense<0.000000e+00> : vector<128xf32>
    %151 = vector.multi_reduction <add>, %150, %cst_69 [1] : vector<128x5xf32> to vector<128xf32>
    %152 = vector.shape_cast %151 : vector<128xf32> to vector<128x1xf32>
    %153 = math.log %152 : vector<128x1xf32>
    %cst_70 = arith.constant 0.000000e+00 : f32
    %154 = vector.broadcast %cst_70 : f32 to vector<128x1xf32>
    %155 = arith.subf %154, %153 : vector<128x1xf32>
    %156 = arith.fptosi %147 : vector<128x1xf32> to vector<128x1xi32>
    %157 = vector.shape_cast %156 : vector<128x1xi32> to vector<1x1x128xi32>
    %c0_71 = arith.constant 0 : index
    %c0_72 = arith.constant 0 : index
    %c0_73 = arith.constant 0 : index
    %158 = vector.load %arg20[%c0_71, %c0_72, %c0_73] : memref<1x1x128xi32, #tpu.memory_space<vmem>>, vector<1x1x128xi32>
    tpu.vector_store %arg20[%c0_71, %c0_72, %c0_73], %157 {strides = array<i32>} : memref<1x1x128xi32, #tpu.memory_space<vmem>>, vector<1x1x128xi32>,
    %159 = vector.shape_cast %155 : vector<128x1xf32> to vector<1x1x128xf32>
    %c0_74 = arith.constant 0 : index
    %c0_75 = arith.constant 0 : index
    %c0_76 = arith.constant 0 : index
    %160 = vector.load %arg21[%c0_74, %c0_75, %c0_76] : memref<1x1x128xf32, #tpu.memory_space<vmem>>, vector<1x1x128xf32>
    tpu.vector_store %arg21[%c0_74, %c0_75, %c0_76], %159 {strides = array<i32>} : memref<1x1x128xf32, #tpu.memory_space<vmem>>, vector<1x1x128xf32>,
    return
  }
  func.func @transform_0(%arg0: i32) -> (i32, i32) {
    %c0_i32 = arith.constant 0 : i32
    %c0_i32_0 = arith.constant 0 : i32
    return %arg0, %c0_i32 : i32, i32
  }
  func.func @transform_1(%arg0: i32) -> (i32, i32) {
    %c0_i32 = arith.constant 0 : i32
    %c0_i32_0 = arith.constant 0 : i32
    return %arg0, %c0_i32 : i32, i32
  }
  func.func @transform_2(%arg0: i32) -> (i32, i32) {
    %c0_i32 = arith.constant 0 : i32
    %c0_i32_0 = arith.constant 0 : i32
    %c0_i32_1 = arith.constant 0 : i32
    return %c0_i32, %c0_i32_0 : i32, i32
  }
  func.func @transform_3(%arg0: i32) -> (i32, i32) {
    %c0_i32 = arith.constant 0 : i32
    %c0_i32_0 = arith.constant 0 : i32
    %c0_i32_1 = arith.constant 0 : i32
    return %c0_i32, %c0_i32_0 : i32, i32
  }
  func.func @transform_4(%arg0: i32) -> (i32, i32) {
    %c0_i32 = arith.constant 0 : i32
    %c0_i32_0 = arith.constant 0 : i32
    %c0_i32_1 = arith.constant 0 : i32
    return %c0_i32, %c0_i32_0 : i32, i32
  }
  func.func @transform_5(%arg0: i32) -> (i32, i32) {
    %c0_i32 = arith.constant 0 : i32
    %c0_i32_0 = arith.constant 0 : i32
    %c0_i32_1 = arith.constant 0 : i32
    return %c0_i32, %c0_i32_0 : i32, i32
  }
  func.func @transform_6(%arg0: i32) -> (i32, i32) {
    %c0_i32 = arith.constant 0 : i32
    %c0_i32_0 = arith.constant 0 : i32
    %c0_i32_1 = arith.constant 0 : i32
    return %c0_i32, %c0_i32_0 : i32, i32
  }
  func.func @transform_7(%arg0: i32) -> (i32, i32) {
    %c0_i32 = arith.constant 0 : i32
    %c0_i32_0 = arith.constant 0 : i32
    %c0_i32_1 = arith.constant 0 : i32
    return %c0_i32, %c0_i32_0 : i32, i32
  }
  func.func @transform_8(%arg0: i32) -> (i32, i32) {
    %c0_i32 = arith.constant 0 : i32
    %c0_i32_0 = arith.constant 0 : i32
    %c0_i32_1 = arith.constant 0 : i32
    return %c0_i32, %c0_i32_0 : i32, i32
  }
  func.func @transform_9(%arg0: i32) -> (i32, i32) {
    %c0_i32 = arith.constant 0 : i32
    %c0_i32_0 = arith.constant 0 : i32
    %c0_i32_1 = arith.constant 0 : i32
    return %c0_i32, %c0_i32_0 : i32, i32
  }
  func.func @transform_10(%arg0: i32) -> (i32, i32) {
    %c0_i32 = arith.constant 0 : i32
    %c0_i32_0 = arith.constant 0 : i32
    %c0_i32_1 = arith.constant 0 : i32
    return %c0_i32, %c0_i32_0 : i32, i32
  }
  func.func @transform_11(%arg0: i32) -> (i32, i32) {
    %c0_i32 = arith.constant 0 : i32
    %c0_i32_0 = arith.constant 0 : i32
    %c0_i32_1 = arith.constant 0 : i32
    return %c0_i32, %c0_i32_0 : i32, i32
  }
  func.func @transform_12(%arg0: i32) -> (i32, i32) {
    %c0_i32 = arith.constant 0 : i32
    %c0_i32_0 = arith.constant 0 : i32
    %c0_i32_1 = arith.constant 0 : i32
    return %c0_i32, %c0_i32_0 : i32, i32
  }
  func.func @transform_13(%arg0: i32) -> (i32, i32) {
    %c0_i32 = arith.constant 0 : i32
    %c0_i32_0 = arith.constant 0 : i32
    %c0_i32_1 = arith.constant 0 : i32
    return %c0_i32, %c0_i32_0 : i32, i32
  }
  func.func @transform_14(%arg0: i32) -> (i32, i32) {
    %c0_i32 = arith.constant 0 : i32
    %c0_i32_0 = arith.constant 0 : i32
    %c0_i32_1 = arith.constant 0 : i32
    return %c0_i32, %c0_i32_0 : i32, i32
  }
  func.func @transform_15(%arg0: i32) -> (i32, i32) {
    %c0_i32 = arith.constant 0 : i32
    %c0_i32_0 = arith.constant 0 : i32
    %c0_i32_1 = arith.constant 0 : i32
    return %c0_i32, %c0_i32_0 : i32, i32
  }
  func.func @transform_16(%arg0: i32) -> (i32, i32) {
    %c0_i32 = arith.constant 0 : i32
    %c0_i32_0 = arith.constant 0 : i32
    %c0_i32_1 = arith.constant 0 : i32
    return %c0_i32, %c0_i32_0 : i32, i32
  }
  func.func @transform_17(%arg0: i32) -> (i32, i32) {
    %c0_i32 = arith.constant 0 : i32
    %c0_i32_0 = arith.constant 0 : i32
    %c0_i32_1 = arith.constant 0 : i32
    return %c0_i32, %c0_i32_0 : i32, i32
  }
  func.func @transform_18(%arg0: i32) -> (i32, i32) {
    %c0_i32 = arith.constant 0 : i32
    %c0_i32_0 = arith.constant 0 : i32
    %c0_i32_1 = arith.constant 0 : i32
    return %c0_i32, %c0_i32_0 : i32, i32
  }
  func.func @transform_19(%arg0: i32) -> (i32, i32, i32) {
    %c0_i32 = arith.constant 0 : i32
    %c0_i32_0 = arith.constant 0 : i32
    %c0_i32_1 = arith.constant 0 : i32
    return %arg0, %c0_i32, %c0_i32_0 : i32, i32, i32
  }
  func.func @transform_20(%arg0: i32) -> (i32, i32, i32) {
    %c0_i32 = arith.constant 0 : i32
    %c0_i32_0 = arith.constant 0 : i32
    %c0_i32_1 = arith.constant 0 : i32
    return %arg0, %c0_i32, %c0_i32_0 : i32, i32, i32
  }
}

</mosaic_0001>

<llo_original>
// kernel: tpu_custom_call.1
$region0: #{tpu_custom_call.1}
  #allocation0 [shape = 'u32[]', space=smem, size = 0x4, offset = 0x4, fixed_abs, tag = 'smem constant byte address 0x4 - core index']
  #allocation1 [shape = 'u32[144,128]{1,0:T(1,128)}', space=vmem, size = 0x12000, scoped, tag = 'internal scratch']
  %s0 = inlined_call_operand.vmem [shape: f32[128,20], index: 0, kind: input, shape index: {}]
  %s1 = inlined_call_operand.vmem [shape: s32[128,3], index: 1, kind: input, shape index: {}]
  %s2 = inlined_call_operand.vmem [shape: f32[3,15], index: 2, kind: input, shape index: {}]
  %s3 = inlined_call_operand.vmem [shape: f32[1,15], index: 3, kind: input, shape index: {}]
  %s4 = inlined_call_operand.vmem [shape: f32[1,20], index: 4, kind: input, shape index: {}]
  %s5 = inlined_call_operand.vmem [shape: f32[1,20], index: 5, kind: input, shape index: {}]
  %s6 = inlined_call_operand.vmem [shape: f32[1,15], index: 6, kind: input, shape index: {}]
  %s7 = inlined_call_operand.vmem [shape: f32[1,15], index: 7, kind: input, shape index: {}]
  %s8 = inlined_call_operand.vmem [shape: bf16[20,32], index: 8, kind: input, shape index: {}]
  %s9 = inlined_call_operand.vmem [shape: bf16[15,32], index: 9, kind: input, shape index: {}]
  %s10 = inlined_call_operand.vmem [shape: f32[1,32], index: 10, kind: input, shape index: {}]
  %s11 = inlined_call_operand.vmem [shape: f32[1,32], index: 11, kind: input, shape index: {}]
  %s12 = inlined_call_operand.vmem [shape: f32[1,32], index: 12, kind: input, shape index: {}]
  %s13 = inlined_call_operand.vmem [shape: bf16[32,32], index: 13, kind: input, shape index: {}]
  %s14 = inlined_call_operand.vmem [shape: f32[1,32], index: 14, kind: input, shape index: {}]
  %s15 = inlined_call_operand.vmem [shape: f32[1,32], index: 15, kind: input, shape index: {}]
  %s16 = inlined_call_operand.vmem [shape: f32[1,32], index: 16, kind: input, shape index: {}]
  %s17 = inlined_call_operand.vmem [shape: bf16[32,5], index: 17, kind: input, shape index: {}]
  %s18 = inlined_call_operand.vmem [shape: f32[1,5], index: 18, kind: input, shape index: {}]
  %s19 = inlined_call_operand.hbm [shape: s32[1,1,128], index: 19, kind: output, shape index: {0}]
  %s20 = inlined_call_operand.hbm [shape: f32[1,1,128], index: 20, kind: output, shape index: {1}]
  %21 = xla_tuple %s19, %s20
  %s22 = sld [smem:[#allocation0]]
  $region94: #{tpu_custom_call.1} parent=0
    _
  %s24 = ssub.s32 1, %s22
  %s25 = scalar_select 0, %s24, %s22
  $region1: #{tpu_custom_call.1} parent=0
    #allocation2 [shape = 'u8[512]{0}', space=vmem, size = 0x400, scoped, tag = 'output window, operand 0, single buffered']
    #allocation3 [shape = 's32[1]{0}', space=sflag, size = 0x4, scoped, tag = 'scoped memory for tpu_custom_call.1']
    #allocation4 [shape = 'u8[512]{0}', space=vmem, size = 0x400, scoped, tag = 'output window, operand 1, single buffered']
    #allocation5 [shape = 's32[1]{0}', space=sflag, size = 0x4, scoped, tag = 'scoped memory for tpu_custom_call.1']
    %26 = vsyncpa [#allocation3], 0
    %27 = vsyncpa [#allocation5], 0
    // Predicated region
    $region2: #{tpu_custom_call.1} parent=1 // pred_check
      _
    $region3: #{tpu_custom_call.1} parent=1 // pred_check_branch
      %29 = sbr.rel (0) target = $region5
    $region4: #{tpu_custom_call.1} parent=1 // pred_region
      _
    $region5: #{tpu_custom_call.1} parent=1 // pred_fallthru
      _
    // Predicated region
    $region6: #{tpu_custom_call.1} parent=1 // pred_check
      _
    $region7: #{tpu_custom_call.1} parent=1 // pred_check_branch
      %31 = sbr.rel (0) target = $region9
    $region8: #{tpu_custom_call.1} parent=1 // pred_region
      _
    $region9: #{tpu_custom_call.1} parent=1 // pred_fallthru
      _
    // Predicated region
    $region10: #{tpu_custom_call.1} parent=1 // pred_check
      _
    $region11: #{tpu_custom_call.1} parent=1 // pred_check_branch
      %33 = sbr.rel (0) target = $region13
    $region12: #{tpu_custom_call.1} parent=1 // pred_region
      _
    $region13: #{tpu_custom_call.1} parent=1 // pred_fallthru
      _
    // Predicated region
    $region14: #{tpu_custom_call.1} parent=1 // pred_check
      _
    $region15: #{tpu_custom_call.1} parent=1 // pred_check_branch
      %35 = sbr.rel (0) target = $region17
    $region16: #{tpu_custom_call.1} parent=1 // pred_region
      _
    $region17: #{tpu_custom_call.1} parent=1 // pred_fallthru
      _
    // Predicated region
    $region18: #{tpu_custom_call.1} parent=1 // pred_check
      _
    $region19: #{tpu_custom_call.1} parent=1 // pred_check_branch
      %37 = sbr.rel (0) target = $region21
    $region20: #{tpu_custom_call.1} parent=1 // pred_region
      _
    $region21: #{tpu_custom_call.1} parent=1 // pred_fallthru
      _
    // Predicated region
    $region22: #{tpu_custom_call.1} parent=1 // pred_check
      _
    $region23: #{tpu_custom_call.1} parent=1 // pred_check_branch
      %39 = sbr.rel (0) target = $region25
    $region24: #{tpu_custom_call.1} parent=1 // pred_region
      _
    $region25: #{tpu_custom_call.1} parent=1 // pred_fallthru
      _
    // Predicated region
    $region26: #{tpu_custom_call.1} parent=1 // pred_check
      _
    $region27: #{tpu_custom_call.1} parent=1 // pred_check_branch
      %41 = sbr.rel (0) target = $region29
    $region28: #{tpu_custom_call.1} parent=1 // pred_region
      _
    $region29: #{tpu_custom_call.1} parent=1 // pred_fallthru
      _
    // Predicated region
    $region30: #{tpu_custom_call.1} parent=1 // pred_check
      _
    $region31: #{tpu_custom_call.1} parent=1 // pred_check_branch
      %43 = sbr.rel (0) target = $region33
    $region32: #{tpu_custom_call.1} parent=1 // pred_region
      _
    $region33: #{tpu_custom_call.1} parent=1 // pred_fallthru
      _
    // Predicated region
    $region34: #{tpu_custom_call.1} parent=1 // pred_check
      _
    $region35: #{tpu_custom_call.1} parent=1 // pred_check_branch
      %45 = sbr.rel (0) target = $region37
    $region36: #{tpu_custom_call.1} parent=1 // pred_region
      _
    $region37: #{tpu_custom_call.1} parent=1 // pred_fallthru
      _
    // Predicated region
    $region38: #{tpu_custom_call.1} parent=1 // pred_check
      _
    $region39: #{tpu_custom_call.1} parent=1 // pred_check_branch
      %47 = sbr.rel (0) target = $region41
    $region40: #{tpu_custom_call.1} parent=1 // pred_region
      _
    $region41: #{tpu_custom_call.1} parent=1 // pred_fallthru
      _
    // Predicated region
    $region42: #{tpu_custom_call.1} parent=1 // pred_check
      _
    $region43: #{tpu_custom_call.1} parent=1 // pred_check_branch
      %49 = sbr.rel (0) target = $region45
    $region44: #{tpu_custom_call.1} parent=1 // pred_region
      _
    $region45: #{tpu_custom_call.1} parent=1 // pred_fallthru
      _
    // Predicated region
    $region46: #{tpu_custom_call.1} parent=1 // pred_check
      _
    $region47: #{tpu_custom_call.1} parent=1 // pred_check_branch
      %51 = sbr.rel (0) target = $region49
    $region48: #{tpu_custom_call.1} parent=1 // pred_region
      _
    $region49: #{tpu_custom_call.1} parent=1 // pred_fallthru
      _
    // Predicated region
    $region50: #{tpu_custom_call.1} parent=1 // pred_check
      _
    $region51: #{tpu_custom_call.1} parent=1 // pred_check_branch
      %53 = sbr.rel (0) target = $region53
    $region52: #{tpu_custom_call.1} parent=1 // pred_region
      _
    $region53: #{tpu_custom_call.1} parent=1 // pred_fallthru
      _
    // Predicated region
    $region54: #{tpu_custom_call.1} parent=1 // pred_check
      _
    $region55: #{tpu_custom_call.1} parent=1 // pred_check_branch
      %55 = sbr.rel (0) target = $region57
    $region56: #{tpu_custom_call.1} parent=1 // pred_region
      _
    $region57: #{tpu_custom_call.1} parent=1 // pred_fallthru
      _
    // Predicated region
    $region58: #{tpu_custom_call.1} parent=1 // pred_check
      _
    $region59: #{tpu_custom_call.1} parent=1 // pred_check_branch
      %57 = sbr.rel (0) target = $region61
    $region60: #{tpu_custom_call.1} parent=1 // pred_region
      _
    $region61: #{tpu_custom_call.1} parent=1 // pred_fallthru
      _
    // Predicated region
    $region62: #{tpu_custom_call.1} parent=1 // pred_check
      _
    $region63: #{tpu_custom_call.1} parent=1 // pred_check_branch
      %59 = sbr.rel (0) target = $region65
    $region64: #{tpu_custom_call.1} parent=1 // pred_region
      _
    $region65: #{tpu_custom_call.1} parent=1 // pred_fallthru
      _
    // Predicated region
    $region66: #{tpu_custom_call.1} parent=1 // pred_check
      _
    $region67: #{tpu_custom_call.1} parent=1 // pred_check_branch
      %61 = sbr.rel (0) target = $region69
    $region68: #{tpu_custom_call.1} parent=1 // pred_region
      _
    $region69: #{tpu_custom_call.1} parent=1 // pred_fallthru
      _
    // Predicated region
    $region70: #{tpu_custom_call.1} parent=1 // pred_check
      _
    $region71: #{tpu_custom_call.1} parent=1 // pred_check_branch
      %63 = sbr.rel (0) target = $region73
    $region72: #{tpu_custom_call.1} parent=1 // pred_region
      _
    $region73: #{tpu_custom_call.1} parent=1 // pred_fallthru
      _
    // Predicated region
    $region74: #{tpu_custom_call.1} parent=1 // pred_check
      _
    $region75: #{tpu_custom_call.1} parent=1 // pred_check_branch
      %65 = sbr.rel (0) target = $region77
    $region76: #{tpu_custom_call.1} parent=1 // pred_region
      _
    $region77: #{tpu_custom_call.1} parent=1 // pred_fallthru
      _
    %v67 = vld [vmem:[%s0] sm:$0xff]
    %v68 = vld [vmem:[%s0 + $0x8] sm:$0xff]
    %v69 = vld [vmem:[%s0 + $0x10] sm:$0xff]
    %v70 = vld [vmem:[%s0 + $0x18] sm:$0xff]
    %v71 = vld [vmem:[%s0 + $0x20] sm:$0xff]
    %v72 = vld [vmem:[%s0 + $0x28] sm:$0xff]
    %v73 = vld [vmem:[%s0 + $0x30] sm:$0xff]
    %v74 = vld [vmem:[%s0 + $0x38] sm:$0xff]
    %v75 = vld [vmem:[%s0 + $0x40] sm:$0xff]
    %v76 = vld [vmem:[%s0 + $0x48] sm:$0xff]
    %v77 = vld [vmem:[%s0 + $0x50] sm:$0xff]
    %v78 = vld [vmem:[%s0 + $0x58] sm:$0xff]
    %v79 = vld [vmem:[%s0 + $0x60] sm:$0xff]
    %v80 = vld [vmem:[%s0 + $0x68] sm:$0xff]
    %v81 = vld [vmem:[%s0 + $0x70] sm:$0xff]
    %v82 = vld [vmem:[%s0 + $0x78] sm:$0xff]
    %v83 = vld [vmem:[%s1] sm:$0xff]
    %v84 = vld [vmem:[%s1 + $0x8] sm:$0xff]
    %v85 = vld [vmem:[%s1 + $0x10] sm:$0xff]
    %v86 = vld [vmem:[%s1 + $0x18] sm:$0xff]
    %v87 = vld [vmem:[%s1 + $0x20] sm:$0xff]
    %v88 = vld [vmem:[%s1 + $0x28] sm:$0xff]
    %v89 = vld [vmem:[%s1 + $0x30] sm:$0xff]
    %v90 = vld [vmem:[%s1 + $0x38] sm:$0xff]
    %v91 = vld [vmem:[%s1 + $0x40] sm:$0xff]
    %v92 = vld [vmem:[%s1 + $0x48] sm:$0xff]
    %v93 = vld [vmem:[%s1 + $0x50] sm:$0xff]
    %v94 = vld [vmem:[%s1 + $0x58] sm:$0xff]
    %v95 = vld [vmem:[%s1 + $0x60] sm:$0xff]
    %v96 = vld [vmem:[%s1 + $0x68] sm:$0xff]
    %v97 = vld [vmem:[%s1 + $0x70] sm:$0xff]
    %v98 = vld [vmem:[%s1 + $0x78] sm:$0xff]
    %v99 = vcvt.s32.f32 %v83
    %v100 = vcvt.s32.f32 %v84
    %v101 = vcvt.s32.f32 %v85
    %v102 = vcvt.s32.f32 %v86
    %v103 = vcvt.s32.f32 %v87
    %v104 = vcvt.s32.f32 %v88
    %v105 = vcvt.s32.f32 %v89
    %v106 = vcvt.s32.f32 %v90
    %v107 = vcvt.s32.f32 %v91
    %v108 = vcvt.s32.f32 %v92
    %v109 = vcvt.s32.f32 %v93
    %v110 = vcvt.s32.f32 %v94
    %v111 = vcvt.s32.f32 %v95
    %v112 = vcvt.s32.f32 %v96
    %v113 = vcvt.s32.f32 %v97
    %v114 = vcvt.s32.f32 %v98
    %v115 = vld [vmem:[%s2] sm:$0x7]
    %vm116 = vcmask 23552
    %v118 = vsel %vm116, %v99, 0
    %v121 = vsel %vm116, %v100, 0
    %v124 = vsel %vm116, %v101, 0
    %v127 = vsel %vm116, %v102, 0
    %v130 = vsel %vm116, %v103, 0
    %v133 = vsel %vm116, %v104, 0
    %v136 = vsel %vm116, %v105, 0
    %v139 = vsel %vm116, %v106, 0
    %v142 = vsel %vm116, %v107, 0
    %v145 = vsel %vm116, %v108, 0
    %v148 = vsel %vm116, %v109, 0
    %v151 = vsel %vm116, %v110, 0
    %v154 = vsel %vm116, %v111, 0
    %v157 = vsel %vm116, %v112, 0
    %v160 = vsel %vm116, %v113, 0
    %v163 = vsel %vm116, %v114, 0
    %vm165 = vcmask 1042432
    %v167 = vsel %vm165, %v115, 0
    %169 = vmatprep.subr.mxu0 0.0
    %170 = vmatpush1.msra.mxu0 0.0
    %171 = vmatprep.subr.mxu0 0.0
    %172 = vmatpush1.msra.mxu0 0.0
    %173 = vmatprep.subr.mxu0 0.0
    %174 = vmatpush1.msra.mxu0 0.0
    %175 = vmatprep.subr.mxu0 0.0
    %176 = vmatpush1.msra.mxu0 0.0
    %177 = vmatprep.subr.mxu0 0.0
    %178 = vmatpush1.msra.mxu0 0.0
    %179 = vmatprep.subr.mxu0 0.0
    %180 = vmatpush1.msra.mxu0 0.0
    %181 = vmatprep.subr.mxu0 0.0
    %182 = vmatpush1.msra.mxu0 0.0
    %183 = vmatprep.subr.mxu0 0.0
    %184 = vmatpush1.msra.mxu0 0.0
    %185 = vmatprep.subr.mxu0 0.0
    %186 = vmatpush1.msra.mxu0 0.0
    %187 = vmatprep.subr.mxu0 0.0
    %188 = vmatpush1.msra.mxu0 0.0
    %189 = vmatprep.subr.mxu0 0.0
    %190 = vmatpush1.msra.mxu0 0.0
    %191 = vmatprep.subr.mxu0 0.0
    %192 = vmatpush1.msra.mxu0 0.0
    %193 = vmatprep.subr.mxu0 0.0
    %194 = vmatpush1.msra.mxu0 0.0
    %195 = vmatprep.subr.mxu0 0.0
    %196 = vmatpush1.msra.mxu0 0.0
    %197 = vmatprep.subr.mxu0 0.0
    %198 = vmatpush1.msra.mxu0 0.0
    %199 = vmatprep.subr.mxu0 0.0
    %200 = vmatpush1.msra.mxu0 %v167
    %201 = vmatprep.subr.mxu0 0.0
    %202 = vmatpush2.msra.mxu0 0.0
    %203 = vmatprep.subr.mxu0 0.0
    %204 = vmatpush2.msra.mxu0 0.0
    %205 = vmatprep.subr.mxu0 0.0
    %206 = vmatpush2.msra.mxu0 0.0
    %207 = vmatprep.subr.mxu0 0.0
    %208 = vmatpush2.msra.mxu0 0.0
    %209 = vmatprep.subr.mxu0 0.0
    %210 = vmatpush2.msra.mxu0 0.0
    %211 = vmatprep.subr.mxu0 0.0
    %212 = vmatpush2.msra.mxu0 0.0
    %213 = vmatprep.subr.mxu0 0.0
    %214 = vmatpush2.msra.mxu0 0.0
    %215 = vmatprep.subr.mxu0 0.0
    %216 = vmatpush2.msra.mxu0 0.0
    %217 = vmatprep.subr.mxu0 0.0
    %218 = vmatpush2.msra.mxu0 0.0
    %219 = vmatprep.subr.mxu0 0.0
    %220 = vmatpush2.msra.mxu0 0.0
    %221 = vmatprep.subr.mxu0 0.0
    %222 = vmatpush2.msra.mxu0 0.0
    %223 = vmatprep.subr.mxu0 0.0
    %224 = vmatpush2.msra.mxu0 0.0
    %225 = vmatprep.subr.mxu0 0.0
    %226 = vmatpush2.msra.mxu0 0.0
    %227 = vmatprep.subr.mxu0 0.0
    %228 = vmatpush2.msra.mxu0 0.0
    %229 = vmatprep.subr.mxu0 0.0
    %230 = vmatpush2.msra.mxu0 0.0
    %231 = vmatprep.subr.mxu0 0.0
    %232 = vmatpush2.msra.mxu0 0.0
    %233 = vmatprep.mubr.f32.mxu0 0.0
    %234 = vmatmul.mubr.f32.gmra.mxu0 %v118
    %v235 = vpop.f32.mrf.mxu0
    %v236 = vadd.f32 0.0, %v235
    %v237 = vpop.f32.mrf.mxu0
    %238 = vmatprep.mubr.f32.mxu0 0.0
    %239 = vmatmul.mubr.f32.gmra.mxu0 %v121
    %v240 = vpop.f32.mrf.mxu0
    %v241 = vadd.f32 0.0, %v240
    %v242 = vpop.f32.mrf.mxu0
    %243 = vmatprep.mubr.f32.mxu0 0.0
    %244 = vmatmul.mubr.f32.gmra.mxu0 %v124
    %v245 = vpop.f32.mrf.mxu0
    %v246 = vadd.f32 0.0, %v245
    %v247 = vpop.f32.mrf.mxu0
    %248 = vmatprep.mubr.f32.mxu0 0.0
    %249 = vmatmul.mubr.f32.gmra.mxu0 %v127
    %v250 = vpop.f32.mrf.mxu0
    %v251 = vadd.f32 0.0, %v250
    %v252 = vpop.f32.mrf.mxu0
    %253 = vmatprep.mubr.f32.mxu0 0.0
    %254 = vmatmul.mubr.f32.gmra.mxu0 %v130
    %v255 = vpop.f32.mrf.mxu0
    %v256 = vadd.f32 0.0, %v255
    %v257 = vpop.f32.mrf.mxu0
    %258 = vmatprep.mubr.f32.mxu0 0.0
    %259 = vmatmul.mubr.f32.gmra.mxu0 %v133
    %v260 = vpop.f32.mrf.mxu0
    %v261 = vadd.f32 0.0, %v260
    %v262 = vpop.f32.mrf.mxu0
    %263 = vmatprep.mubr.f32.mxu0 0.0
    %264 = vmatmul.mubr.f32.gmra.mxu0 %v136
    %v265 = vpop.f32.mrf.mxu0
    %v266 = vadd.f32 0.0, %v265
    %v267 = vpop.f32.mrf.mxu0
    %268 = vmatprep.mubr.f32.mxu0 0.0
    %269 = vmatmul.mubr.f32.gmra.mxu0 %v139
    %v270 = vpop.f32.mrf.mxu0
    %v271 = vadd.f32 0.0, %v270
    %v272 = vpop.f32.mrf.mxu0
    %273 = vmatprep.mubr.f32.mxu0 0.0
    %274 = vmatmul.mubr.f32.gmra.mxu0 %v142
    %v275 = vpop.f32.mrf.mxu0
    %v276 = vadd.f32 0.0, %v275
    %v277 = vpop.f32.mrf.mxu0
    %278 = vmatprep.mubr.f32.mxu0 0.0
    %279 = vmatmul.mubr.f32.gmra.mxu0 %v145
    %v280 = vpop.f32.mrf.mxu0
    %v281 = vadd.f32 0.0, %v280
    %v282 = vpop.f32.mrf.mxu0
    %283 = vmatprep.mubr.f32.mxu0 0.0
    %284 = vmatmul.mubr.f32.gmra.mxu0 %v148
    %v285 = vpop.f32.mrf.mxu0
    %v286 = vadd.f32 0.0, %v285
    %v287 = vpop.f32.mrf.mxu0
    %288 = vmatprep.mubr.f32.mxu0 0.0
    %289 = vmatmul.mubr.f32.gmra.mxu0 %v151
    %v290 = vpop.f32.mrf.mxu0
    %v291 = vadd.f32 0.0, %v290
    %v292 = vpop.f32.mrf.mxu0
    %293 = vmatprep.mubr.f32.mxu0 0.0
    %294 = vmatmul.mubr.f32.gmra.mxu0 %v154
    %v295 = vpop.f32.mrf.mxu0
    %v296 = vadd.f32 0.0, %v295
    %v297 = vpop.f32.mrf.mxu0
    %298 = vmatprep.mubr.f32.mxu0 0.0
    %299 = vmatmul.mubr.f32.gmra.mxu0 %v157
    %v300 = vpop.f32.mrf.mxu0
    %v301 = vadd.f32 0.0, %v300
    %v302 = vpop.f32.mrf.mxu0
    %303 = vmatprep.mubr.f32.mxu0 0.0
    %304 = vmatmul.mubr.f32.gmra.mxu0 %v160
    %v305 = vpop.f32.mrf.mxu0
    %v306 = vadd.f32 0.0, %v305
    %v307 = vpop.f32.mrf.mxu0
    %308 = vmatprep.mubr.f32.mxu0 0.0
    %309 = vmatmul.mubr.f32.gmra.mxu0 %v163
    %v310 = vpop.f32.mrf.mxu0
    %v311 = vadd.f32 0.0, %v310
    %v312 = vpop.f32.mrf.mxu0
    %313 = vdwg.mxu0
    %v314 = vld [vmem:[%s3] sm:$0x1]
    %v316 = vlaneseq
    %v317 = vshrl.u32 %v316, 7
    %v318 = vsub.s32 0, %v317
    %v319 = vrot.slane %v314, %v318
    %v321 = vsub.f32 %v236, %v319
    %v322 = vsub.f32 %v241, %v319
    %v323 = vsub.f32 %v246, %v319
    %v324 = vsub.f32 %v251, %v319
    %v325 = vsub.f32 %v256, %v319
    %v326 = vsub.f32 %v261, %v319
    %v327 = vsub.f32 %v266, %v319
    %v328 = vsub.f32 %v271, %v319
    %v329 = vsub.f32 %v276, %v319
    %v330 = vsub.f32 %v281, %v319
    %v331 = vsub.f32 %v286, %v319
    %v332 = vsub.f32 %v291, %v319
    %v333 = vsub.f32 %v296, %v319
    %v334 = vsub.f32 %v301, %v319
    %v335 = vsub.f32 %v306, %v319
    %v336 = vsub.f32 %v311, %v319
    %v337 = vand.u32 2147483647, %v321
    %v338 = vand.u32 2147483647, %v322
    %v339 = vand.u32 2147483647, %v323
    %v340 = vand.u32 2147483647, %v324
    %v341 = vand.u32 2147483647, %v325
    %v342 = vand.u32 2147483647, %v326
    %v343 = vand.u32 2147483647, %v327
    %v344 = vand.u32 2147483647, %v328
    %v345 = vand.u32 2147483647, %v329
    %v346 = vand.u32 2147483647, %v330
    %v347 = vand.u32 2147483647, %v331
    %v348 = vand.u32 2147483647, %v332
    %v349 = vand.u32 2147483647, %v333
    %v350 = vand.u32 2147483647, %v334
    %v351 = vand.u32 2147483647, %v335
    %v352 = vand.u32 2147483647, %v336
    %vm353 = vcmp.lt.f32.partialorder %v337, 0.5
    %vm354 = vcmp.lt.f32.partialorder %v338, 0.5
    %vm355 = vcmp.lt.f32.partialorder %v339, 0.5
    %vm356 = vcmp.lt.f32.partialorder %v340, 0.5
    %vm357 = vcmp.lt.f32.partialorder %v341, 0.5
    %vm358 = vcmp.lt.f32.partialorder %v342, 0.5
    %vm359 = vcmp.lt.f32.partialorder %v343, 0.5
    %vm360 = vcmp.lt.f32.partialorder %v344, 0.5
    %vm361 = vcmp.lt.f32.partialorder %v345, 0.5
    %vm362 = vcmp.lt.f32.partialorder %v346, 0.5
    %vm363 = vcmp.lt.f32.partialorder %v347, 0.5
    %vm364 = vcmp.lt.f32.partialorder %v348, 0.5
    %vm365 = vcmp.lt.f32.partialorder %v349, 0.5
    %vm366 = vcmp.lt.f32.partialorder %v350, 0.5
    %vm367 = vcmp.lt.f32.partialorder %v351, 0.5
    %vm368 = vcmp.lt.f32.partialorder %v352, 0.5
    %v369 = vsel %vm353, 1.0, 0.0
    %v370 = vsel %vm354, 1.0, 0.0
    %v371 = vsel %vm355, 1.0, 0.0
    %v372 = vsel %vm356, 1.0, 0.0
    %v373 = vsel %vm357, 1.0, 0.0
    %v374 = vsel %vm358, 1.0, 0.0
    %v375 = vsel %vm359, 1.0, 0.0
    %v376 = vsel %vm360, 1.0, 0.0
    %v377 = vsel %vm361, 1.0, 0.0
    %v378 = vsel %vm362, 1.0, 0.0
    %v379 = vsel %vm363, 1.0, 0.0
    %v380 = vsel %vm364, 1.0, 0.0
    %v381 = vsel %vm365, 1.0, 0.0
    %v382 = vsel %vm366, 1.0, 0.0
    %v383 = vsel %vm367, 1.0, 0.0
    %v384 = vsel %vm368, 1.0, 0.0
    %vm385 = vcmask 162816
    %v386 = vsel %vm385, %v67, 0.0
    %387 = vadd.xlane.f32.xlu0 %v386
    %v388 = vpop.xlane.xlu0 %387
    %v389 = vsel %vm385, %v68, 0.0
    %390 = vadd.xlane.f32.xlu0 %v389
    %v391 = vpop.xlane.xlu0 %390
    %v392 = vsel %vm385, %v69, 0.0
    %393 = vadd.xlane.f32.xlu0 %v392
    %v394 = vpop.xlane.xlu0 %393
    %v395 = vsel %vm385, %v70, 0.0
    %396 = vadd.xlane.f32.xlu0 %v395
    %v397 = vpop.xlane.xlu0 %396
    %v398 = vsel %vm385, %v71, 0.0
    %399 = vadd.xlane.f32.xlu0 %v398
    %v400 = vpop.xlane.xlu0 %399
    %v401 = vsel %vm385, %v72, 0.0
    %402 = vadd.xlane.f32.xlu0 %v401
    %v403 = vpop.xlane.xlu0 %402
    %v404 = vsel %vm385, %v73, 0.0
    %405 = vadd.xlane.f32.xlu0 %v404
    %v406 = vpop.xlane.xlu0 %405
    %v407 = vsel %vm385, %v74, 0.0
    %408 = vadd.xlane.f32.xlu0 %v407
    %v409 = vpop.xlane.xlu0 %408
    %v410 = vsel %vm385, %v75, 0.0
    %411 = vadd.xlane.f32.xlu0 %v410
    %v412 = vpop.xlane.xlu0 %411
    %v413 = vsel %vm385, %v76, 0.0
    %414 = vadd.xlane.f32.xlu0 %v413
    %v415 = vpop.xlane.xlu0 %414
    %v416 = vsel %vm385, %v77, 0.0
    %417 = vadd.xlane.f32.xlu0 %v416
    %v418 = vpop.xlane.xlu0 %417
    %v419 = vsel %vm385, %v78, 0.0
    %420 = vadd.xlane.f32.xlu0 %v419
    %v421 = vpop.xlane.xlu0 %420
    %v422 = vsel %vm385, %v79, 0.0
    %423 = vadd.xlane.f32.xlu0 %v422
    %v424 = vpop.xlane.xlu0 %423
    %v425 = vsel %vm385, %v80, 0.0
    %426 = vadd.xlane.f32.xlu0 %v425
    %v427 = vpop.xlane.xlu0 %426
    %v428 = vsel %vm385, %v81, 0.0
    %429 = vadd.xlane.f32.xlu0 %v428
    %v430 = vpop.xlane.xlu0 %429
    %v431 = vsel %vm385, %v82, 0.0
    %432 = vadd.xlane.f32.xlu0 %v431
    %v433 = vpop.xlane.xlu0 %432
    %v434 = vadd.f32 %v388, 3.0
    %v435 = vadd.f32 %v391, 3.0
    %v436 = vadd.f32 %v394, 3.0
    %v437 = vadd.f32 %v397, 3.0
    %v438 = vadd.f32 %v400, 3.0
    %v439 = vadd.f32 %v403, 3.0
    %v440 = vadd.f32 %v406, 3.0
    %v441 = vadd.f32 %v409, 3.0
    %v442 = vadd.f32 %v412, 3.0
    %v443 = vadd.f32 %v415, 3.0
    %v444 = vadd.f32 %v418, 3.0
    %v445 = vadd.f32 %v421, 3.0
    %v446 = vadd.f32 %v424, 3.0
    %v447 = vadd.f32 %v427, 3.0
    %v448 = vadd.f32 %v430, 3.0
    %v449 = vadd.f32 %v433, 3.0
    %v450 = vrcp.pop 35.0
    %v451 = vmul.f32 %v434, %v450
    %v452 = vmul.f32 %v435, %v450
    %v453 = vmul.f32 %v436, %v450
    %v454 = vmul.f32 %v437, %v450
    %v455 = vmul.f32 %v438, %v450
    %v456 = vmul.f32 %v439, %v450
    %v457 = vmul.f32 %v440, %v450
    %v458 = vmul.f32 %v441, %v450
    %v459 = vmul.f32 %v442, %v450
    %v460 = vmul.f32 %v443, %v450
    %v461 = vmul.f32 %v444, %v450
    %v462 = vmul.f32 %v445, %v450
    %v463 = vmul.f32 %v446, %v450
    %v464 = vmul.f32 %v447, %v450
    %v465 = vmul.f32 %v448, %v450
    %v466 = vmul.f32 %v449, %v450
    %v467 = vsub.f32 %v67, %v451
    %v468 = vsub.f32 %v68, %v452
    %v469 = vsub.f32 %v69, %v453
    %v470 = vsub.f32 %v70, %v454
    %v471 = vsub.f32 %v71, %v455
    %v472 = vsub.f32 %v72, %v456
    %v473 = vsub.f32 %v73, %v457
    %v474 = vsub.f32 %v74, %v458
    %v475 = vsub.f32 %v75, %v459
    %v476 = vsub.f32 %v76, %v460
    %v477 = vsub.f32 %v77, %v461
    %v478 = vsub.f32 %v78, %v462
    %v479 = vsub.f32 %v79, %v463
    %v480 = vsub.f32 %v80, %v464
    %v481 = vsub.f32 %v81, %v465
    %v482 = vsub.f32 %v82, %v466
    %v483 = vmul.f32 %v467, %v467
    %v484 = vmul.f32 %v468, %v468
    %v485 = vmul.f32 %v469, %v469
    %v486 = vmul.f32 %v470, %v470
    %v487 = vmul.f32 %v471, %v471
    %v488 = vmul.f32 %v472, %v472
    %v489 = vmul.f32 %v473, %v473
    %v490 = vmul.f32 %v474, %v474
    %v491 = vmul.f32 %v475, %v475
    %v492 = vmul.f32 %v476, %v476
    %v493 = vmul.f32 %v477, %v477
    %v494 = vmul.f32 %v478, %v478
    %v495 = vmul.f32 %v479, %v479
    %v496 = vmul.f32 %v480, %v480
    %v497 = vmul.f32 %v481, %v481
    %v498 = vmul.f32 %v482, %v482
    %v499 = vsel %vm385, %v483, 0.0
    %500 = vadd.xlane.f32.xlu0 %v499
    %v501 = vpop.xlane.xlu0 %500
    %v502 = vsel %vm385, %v484, 0.0
    %503 = vadd.xlane.f32.xlu0 %v502
    %v504 = vpop.xlane.xlu0 %503
    %v505 = vsel %vm385, %v485, 0.0
    %506 = vadd.xlane.f32.xlu0 %v505
    %v507 = vpop.xlane.xlu0 %506
    %v508 = vsel %vm385, %v486, 0.0
    %509 = vadd.xlane.f32.xlu0 %v508
    %v510 = vpop.xlane.xlu0 %509
    %v511 = vsel %vm385, %v487, 0.0
    %512 = vadd.xlane.f32.xlu0 %v511
    %v513 = vpop.xlane.xlu0 %512
    %v514 = vsel %vm385, %v488, 0.0
    %515 = vadd.xlane.f32.xlu0 %v514
    %v516 = vpop.xlane.xlu0 %515
    %v517 = vsel %vm385, %v489, 0.0
    %518 = vadd.xlane.f32.xlu0 %v517
    %v519 = vpop.xlane.xlu0 %518
    %v520 = vsel %vm385, %v490, 0.0
    %521 = vadd.xlane.f32.xlu0 %v520
    %v522 = vpop.xlane.xlu0 %521
    %v523 = vsel %vm385, %v491, 0.0
    %524 = vadd.xlane.f32.xlu0 %v523
    %v525 = vpop.xlane.xlu0 %524
    %v526 = vsel %vm385, %v492, 0.0
    %527 = vadd.xlane.f32.xlu0 %v526
    %v528 = vpop.xlane.xlu0 %527
    %v529 = vsel %vm385, %v493, 0.0
    %530 = vadd.xlane.f32.xlu0 %v529
    %v531 = vpop.xlane.xlu0 %530
    %v532 = vsel %vm385, %v494, 0.0
    %533 = vadd.xlane.f32.xlu0 %v532
    %v534 = vpop.xlane.xlu0 %533
    %v535 = vsel %vm385, %v495, 0.0
    %536 = vadd.xlane.f32.xlu0 %v535
    %v537 = vpop.xlane.xlu0 %536
    %v538 = vsel %vm385, %v496, 0.0
    %539 = vadd.xlane.f32.xlu0 %v538
    %v540 = vpop.xlane.xlu0 %539
    %v541 = vsel %vm385, %v497, 0.0
    %542 = vadd.xlane.f32.xlu0 %v541
    %v543 = vpop.xlane.xlu0 %542
    %v544 = vsel %vm385, %v498, 0.0
    %545 = vadd.xlane.f32.xlu0 %v544
    %v546 = vpop.xlane.xlu0 %545
    %v547 = vsub.f32 1.0, %v451
    %v548 = vsub.f32 1.0, %v452
    %v549 = vsub.f32 1.0, %v453
    %v550 = vsub.f32 1.0, %v454
    %v551 = vsub.f32 1.0, %v455
    %v552 = vsub.f32 1.0, %v456
    %v553 = vsub.f32 1.0, %v457
    %v554 = vsub.f32 1.0, %v458
    %v555 = vsub.f32 1.0, %v459
    %v556 = vsub.f32 1.0, %v460
    %v557 = vsub.f32 1.0, %v461
    %v558 = vsub.f32 1.0, %v462
    %v559 = vsub.f32 1.0, %v463
    %v560 = vsub.f32 1.0, %v464
    %v561 = vsub.f32 1.0, %v465
    %v562 = vsub.f32 1.0, %v466
    %v563 = vmul.f32 %v547, 3.0
    %v564 = vmul.f32 %v548, 3.0
    %v565 = vmul.f32 %v549, 3.0
    %v566 = vmul.f32 %v550, 3.0
    %v567 = vmul.f32 %v551, 3.0
    %v568 = vmul.f32 %v552, 3.0
    %v569 = vmul.f32 %v553, 3.0
    %v570 = vmul.f32 %v554, 3.0
    %v571 = vmul.f32 %v555, 3.0
    %v572 = vmul.f32 %v556, 3.0
    %v573 = vmul.f32 %v557, 3.0
    %v574 = vmul.f32 %v558, 3.0
    %v575 = vmul.f32 %v559, 3.0
    %v576 = vmul.f32 %v560, 3.0
    %v577 = vmul.f32 %v561, 3.0
    %v578 = vmul.f32 %v562, 3.0
    %v579 = vmul.f32 %v563, %v547
    %v580 = vmul.f32 %v564, %v548
    %v581 = vmul.f32 %v565, %v549
    %v582 = vmul.f32 %v566, %v550
    %v583 = vmul.f32 %v567, %v551
    %v584 = vmul.f32 %v568, %v552
    %v585 = vmul.f32 %v569, %v553
    %v586 = vmul.f32 %v570, %v554
    %v587 = vmul.f32 %v571, %v555
    %v588 = vmul.f32 %v572, %v556
    %v589 = vmul.f32 %v573, %v557
    %v590 = vmul.f32 %v574, %v558
    %v591 = vmul.f32 %v575, %v559
    %v592 = vmul.f32 %v576, %v560
    %v593 = vmul.f32 %v577, %v561
    %v594 = vmul.f32 %v578, %v562
    %v595 = vadd.f32 %v501, %v579
    %v596 = vadd.f32 %v504, %v580
    %v597 = vadd.f32 %v507, %v581
    %v598 = vadd.f32 %v510, %v582
    %v599 = vadd.f32 %v513, %v583
    %v600 = vadd.f32 %v516, %v584
    %v601 = vadd.f32 %v519, %v585
    %v602 = vadd.f32 %v522, %v586
    %v603 = vadd.f32 %v525, %v587
    %v604 = vadd.f32 %v528, %v588
    %v605 = vadd.f32 %v531, %v589
    %v606 = vadd.f32 %v534, %v590
    %v607 = vadd.f32 %v537, %v591
    %v608 = vadd.f32 %v540, %v592
    %v609 = vadd.f32 %v543, %v593
    %v610 = vadd.f32 %v546, %v594
    %v611 = vmul.f32 %v451, 12.0
    %v612 = vmul.f32 %v452, 12.0
    %v613 = vmul.f32 %v453, 12.0
    %v614 = vmul.f32 %v454, 12.0
    %v615 = vmul.f32 %v455, 12.0
    %v616 = vmul.f32 %v456, 12.0
    %v617 = vmul.f32 %v457, 12.0
    %v618 = vmul.f32 %v458, 12.0
    %v619 = vmul.f32 %v459, 12.0
    %v620 = vmul.f32 %v460, 12.0
    %v621 = vmul.f32 %v461, 12.0
    %v622 = vmul.f32 %v462, 12.0
    %v623 = vmul.f32 %v463, 12.0
    %v624 = vmul.f32 %v464, 12.0
    %v625 = vmul.f32 %v465, 12.0
    %v626 = vmul.f32 %v466, 12.0
    %v627 = vmul.f32 %v611, %v451
    %v628 = vmul.f32 %v612, %v452
    %v629 = vmul.f32 %v613, %v453
    %v630 = vmul.f32 %v614, %v454
    %v631 = vmul.f32 %v615, %v455
    %v632 = vmul.f32 %v616, %v456
    %v633 = vmul.f32 %v617, %v457
    %v634 = vmul.f32 %v618, %v458
    %v635 = vmul.f32 %v619, %v459
    %v636 = vmul.f32 %v620, %v460
    %v637 = vmul.f32 %v621, %v461
    %v638 = vmul.f32 %v622, %v462
    %v639 = vmul.f32 %v623, %v463
    %v640 = vmul.f32 %v624, %v464
    %v641 = vmul.f32 %v625, %v465
    %v642 = vmul.f32 %v626, %v466
    %v643 = vadd.f32 %v595, %v627
    %v644 = vadd.f32 %v596, %v628
    %v645 = vadd.f32 %v597, %v629
    %v646 = vadd.f32 %v598, %v630
    %v647 = vadd.f32 %v599, %v631
    %v648 = vadd.f32 %v600, %v632
    %v649 = vadd.f32 %v601, %v633
    %v650 = vadd.f32 %v602, %v634
    %v651 = vadd.f32 %v603, %v635
    %v652 = vadd.f32 %v604, %v636
    %v653 = vadd.f32 %v605, %v637
    %v654 = vadd.f32 %v606, %v638
    %v655 = vadd.f32 %v607, %v639
    %v656 = vadd.f32 %v608, %v640
    %v657 = vadd.f32 %v609, %v641
    %v658 = vadd.f32 %v610, %v642
    %v659 = vmul.f32 %v643, %v450
    %v660 = vmul.f32 %v644, %v450
    %v661 = vmul.f32 %v645, %v450
    %v662 = vmul.f32 %v646, %v450
    %v663 = vmul.f32 %v647, %v450
    %v664 = vmul.f32 %v648, %v450
    %v665 = vmul.f32 %v649, %v450
    %v666 = vmul.f32 %v650, %v450
    %v667 = vmul.f32 %v651, %v450
    %v668 = vmul.f32 %v652, %v450
    %v669 = vmul.f32 %v653, %v450
    %v670 = vmul.f32 %v654, %v450
    %v671 = vmul.f32 %v655, %v450
    %v672 = vmul.f32 %v656, %v450
    %v673 = vmul.f32 %v657, %v450
    %v674 = vmul.f32 %v658, %v450
    %v675 = vadd.f32 %v659, 1e-05
    %v676 = vadd.f32 %v660, 1e-05
    %v677 = vadd.f32 %v661, 1e-05
    %v678 = vadd.f32 %v662, 1e-05
    %v679 = vadd.f32 %v663, 1e-05
    %v680 = vadd.f32 %v664, 1e-05
    %v681 = vadd.f32 %v665, 1e-05
    %v682 = vadd.f32 %v666, 1e-05
    %v683 = vadd.f32 %v667, 1e-05
    %v684 = vadd.f32 %v668, 1e-05
    %v685 = vadd.f32 %v669, 1e-05
    %v686 = vadd.f32 %v670, 1e-05
    %v687 = vadd.f32 %v671, 1e-05
    %v688 = vadd.f32 %v672, 1e-05
    %v689 = vadd.f32 %v673, 1e-05
    %v690 = vadd.f32 %v674, 1e-05
    %v691 = vrsqrt.pop %v675
    %v692 = vrsqrt.pop %v676
    %v693 = vrsqrt.pop %v677
    %v694 = vrsqrt.pop %v678
    %v695 = vrsqrt.pop %v679
    %v696 = vrsqrt.pop %v680
    %v697 = vrsqrt.pop %v681
    %v698 = vrsqrt.pop %v682
    %v699 = vrsqrt.pop %v683
    %v700 = vrsqrt.pop %v684
    %v701 = vrsqrt.pop %v685
    %v702 = vrsqrt.pop %v686
    %v703 = vrsqrt.pop %v687
    %v704 = vrsqrt.pop %v688
    %v705 = vrsqrt.pop %v689
    %v706 = vrsqrt.pop %v690
    %v707 = vmul.f32 %v467, %v691
    %v708 = vmul.f32 %v468, %v692
    %v709 = vmul.f32 %v469, %v693
    %v710 = vmul.f32 %v470, %v694
    %v711 = vmul.f32 %v471, %v695
    %v712 = vmul.f32 %v472, %v696
    %v713 = vmul.f32 %v473, %v697
    %v714 = vmul.f32 %v474, %v698
    %v715 = vmul.f32 %v475, %v699
    %v716 = vmul.f32 %v476, %v700
    %v717 = vmul.f32 %v477, %v701
    %v718 = vmul.f32 %v478, %v702
    %v719 = vmul.f32 %v479, %v703
    %v720 = vmul.f32 %v480, %v704
    %v721 = vmul.f32 %v481, %v705
    %v722 = vmul.f32 %v482, %v706
    %v723 = vld [vmem:[%s4] sm:$0x1]
    %v725 = vlaneseq
    %v726 = vshrl.u32 %v725, 7
    %v727 = vsub.s32 0, %v726
    %v728 = vrot.slane %v723, %v727
    %v730 = vmul.f32 %v707, %v728
    %v731 = vmul.f32 %v708, %v728
    %v732 = vmul.f32 %v709, %v728
    %v733 = vmul.f32 %v710, %v728
    %v734 = vmul.f32 %v711, %v728
    %v735 = vmul.f32 %v712, %v728
    %v736 = vmul.f32 %v713, %v728
    %v737 = vmul.f32 %v714, %v728
    %v738 = vmul.f32 %v715, %v728
    %v739 = vmul.f32 %v716, %v728
    %v740 = vmul.f32 %v717, %v728
    %v741 = vmul.f32 %v718, %v728
    %v742 = vmul.f32 %v719, %v728
    %v743 = vmul.f32 %v720, %v728
    %v744 = vmul.f32 %v721, %v728
    %v745 = vmul.f32 %v722, %v728
    %v746 = vld [vmem:[%s5] sm:$0x1]
    %v748 = vlaneseq
    %v749 = vshrl.u32 %v748, 7
    %v750 = vsub.s32 0, %v749
    %v751 = vrot.slane %v746, %v750
    %v753 = vadd.f32 %v730, %v751
    %v754 = vadd.f32 %v731, %v751
    %v755 = vadd.f32 %v732, %v751
    %v756 = vadd.f32 %v733, %v751
    %v757 = vadd.f32 %v734, %v751
    %v758 = vadd.f32 %v735, %v751
    %v759 = vadd.f32 %v736, %v751
    %v760 = vadd.f32 %v737, %v751
    %v761 = vadd.f32 %v738, %v751
    %v762 = vadd.f32 %v739, %v751
    %v763 = vadd.f32 %v740, %v751
    %v764 = vadd.f32 %v741, %v751
    %v765 = vadd.f32 %v742, %v751
    %v766 = vadd.f32 %v743, %v751
    %v767 = vadd.f32 %v744, %v751
    %v768 = vadd.f32 %v745, %v751
    %v769 = vsub.f32 %v369, %v451
    %v770 = vsub.f32 %v370, %v452
    %v771 = vsub.f32 %v371, %v453
    %v772 = vsub.f32 %v372, %v454
    %v773 = vsub.f32 %v373, %v455
    %v774 = vsub.f32 %v374, %v456
    %v775 = vsub.f32 %v375, %v457
    %v776 = vsub.f32 %v376, %v458
    %v777 = vsub.f32 %v377, %v459
    %v778 = vsub.f32 %v378, %v460
    %v779 = vsub.f32 %v379, %v461
    %v780 = vsub.f32 %v380, %v462
    %v781 = vsub.f32 %v381, %v463
    %v782 = vsub.f32 %v382, %v464
    %v783 = vsub.f32 %v383, %v465
    %v784 = vsub.f32 %v384, %v466
    %v785 = vmul.f32 %v769, %v691
    %v786 = vmul.f32 %v770, %v692
    %v787 = vmul.f32 %v771, %v693
    %v788 = vmul.f32 %v772, %v694
    %v789 = vmul.f32 %v773, %v695
    %v790 = vmul.f32 %v774, %v696
    %v791 = vmul.f32 %v775, %v697
    %v792 = vmul.f32 %v776, %v698
    %v793 = vmul.f32 %v777, %v699
    %v794 = vmul.f32 %v778, %v700
    %v795 = vmul.f32 %v779, %v701
    %v796 = vmul.f32 %v780, %v702
    %v797 = vmul.f32 %v781, %v703
    %v798 = vmul.f32 %v782, %v704
    %v799 = vmul.f32 %v783, %v705
    %v800 = vmul.f32 %v784, %v706
    %v801 = vld [vmem:[%s6] sm:$0x1]
    %v803 = vlaneseq
    %v804 = vshrl.u32 %v803, 7
    %v805 = vsub.s32 0, %v804
    %v806 = vrot.slane %v801, %v805
    %v808 = vmul.f32 %v785, %v806
    %v809 = vmul.f32 %v786, %v806
    %v810 = vmul.f32 %v787, %v806
    %v811 = vmul.f32 %v788, %v806
    %v812 = vmul.f32 %v789, %v806
    %v813 = vmul.f32 %v790, %v806
    %v814 = vmul.f32 %v791, %v806
    %v815 = vmul.f32 %v792, %v806
    %v816 = vmul.f32 %v793, %v806
    %v817 = vmul.f32 %v794, %v806
    %v818 = vmul.f32 %v795, %v806
    %v819 = vmul.f32 %v796, %v806
    %v820 = vmul.f32 %v797, %v806
    %v821 = vmul.f32 %v798, %v806
    %v822 = vmul.f32 %v799, %v806
    %v823 = vmul.f32 %v800, %v806
    %v824 = vld [vmem:[%s7] sm:$0x1]
    %v826 = vlaneseq
    %v827 = vshrl.u32 %v826, 7
    %v828 = vsub.s32 0, %v827
    %v829 = vrot.slane %v824, %v828
    %v831 = vadd.f32 %v808, %v829
    %v832 = vadd.f32 %v809, %v829
    %v833 = vadd.f32 %v810, %v829
    %v834 = vadd.f32 %v811, %v829
    %v835 = vadd.f32 %v812, %v829
    %v836 = vadd.f32 %v813, %v829
    %v837 = vadd.f32 %v814, %v829
    %v838 = vadd.f32 %v815, %v829
    %v839 = vadd.f32 %v816, %v829
    %v840 = vadd.f32 %v817, %v829
    %v841 = vadd.f32 %v818, %v829
    %v842 = vadd.f32 %v819, %v829
    %v843 = vadd.f32 %v820, %v829
    %v844 = vadd.f32 %v821, %v829
    %v845 = vadd.f32 %v822, %v829
    %v846 = vadd.f32 %v823, %v829
    %v847 = vpack.c.bf16 %v754, %v753
    %v848 = vpack.c.bf16 %v756, %v755
    %v849 = vpack.c.bf16 %v758, %v757
    %v850 = vpack.c.bf16 %v760, %v759
    %v851 = vpack.c.bf16 %v762, %v761
    %v852 = vpack.c.bf16 %v764, %v763
    %v853 = vpack.c.bf16 %v766, %v765
    %v854 = vpack.c.bf16 %v768, %v767
    %v855 = vld [vmem:[%s8] sm:$0xf]
    %v856 = vld [vmem:[%s8 + $0x4] sm:$0xf]
    %v857 = vld [vmem:[%s8 + $0x8] sm:$0x3]
    %v858 = vpack.c.bf16 %v832, %v831
    %v859 = vpack.c.bf16 %v834, %v833
    %v860 = vpack.c.bf16 %v836, %v835
    %v861 = vpack.c.bf16 %v838, %v837
    %v862 = vpack.c.bf16 %v840, %v839
    %v863 = vpack.c.bf16 %v842, %v841
    %v864 = vpack.c.bf16 %v844, %v843
    %v865 = vpack.c.bf16 %v846, %v845
    %v866 = vld [vmem:[%s9] sm:$0xf]
    %v867 = vld [vmem:[%s9 + $0x4] sm:$0xf]
    %v870 = vunpack.c.l.b16 %v866
    %v871 = vunpack.c.l.b16 %v867
    %v872 = vpack.c.b16 %v871, %v870
    %vm873 = vcmask 121856
    %v875 = vsel %vm873, %v858, 0
    %v878 = vsel %vm873, %v859, 0
    %v881 = vsel %vm873, %v860, 0
    %v884 = vsel %vm873, %v861, 0
    %v887 = vsel %vm873, %v862, 0
    %v890 = vsel %vm873, %v863, 0
    %v893 = vsel %vm873, %v864, 0
    %v896 = vsel %vm873, %v865, 0
    %vm898 = vcmask 1046528
    %vm899 = vcmask 1047552
    %v900 = vsel %vm898, 4294967295, 65535
    %v901 = vsel %vm899, %v900, 0
    %v903 = vand.u32 %v872, %v901
    %905 = vmatprep.subr.bf16.mxu0 0
    %906 = vmatpush1.bf16.msra.mxu0 0
    %907 = vmatprep.subr.bf16.mxu0 0
    %908 = vmatpush1.bf16.msra.mxu0 0
    %909 = vmatprep.subr.bf16.mxu0 0
    %910 = vmatpush1.bf16.msra.mxu0 0
    %911 = vmatprep.subr.bf16.mxu0 0
    %912 = vmatpush1.bf16.msra.mxu0 0
    %913 = vmatprep.subr.bf16.mxu0 0
    %914 = vmatpush1.bf16.msra.mxu0 0
    %915 = vmatprep.subr.bf16.mxu0 0
    %916 = vmatpush1.bf16.msra.mxu0 0
    %917 = vmatprep.subr.bf16.mxu0 0
    %918 = vmatpush1.bf16.msra.mxu0 0
    %919 = vmatprep.subr.bf16.mxu0 0
    %920 = vmatpush1.bf16.msra.mxu0 %v903
    %921 = vmatprep.subr.bf16.mxu0 0
    %922 = vmatpush2.bf16.msra.mxu0 0
    %923 = vmatprep.subr.bf16.mxu0 0
    %924 = vmatpush2.bf16.msra.mxu0 0
    %925 = vmatprep.subr.bf16.mxu0 0
    %926 = vmatpush2.bf16.msra.mxu0 0
    %927 = vmatprep.subr.bf16.mxu0 0
    %928 = vmatpush2.bf16.msra.mxu0 0
    %929 = vmatprep.subr.bf16.mxu0 0
    %930 = vmatpush2.bf16.msra.mxu0 0
    %931 = vmatprep.subr.bf16.mxu0 0
    %932 = vmatpush2.bf16.msra.mxu0 0
    %933 = vmatprep.subr.bf16.mxu0 0
    %934 = vmatpush2.bf16.msra.mxu0 0
    %935 = vmatprep.subr.bf16.mxu0 0
    %936 = vmatpush2.bf16.msra.mxu0 0
    %937 = vmatprep.mubr.bf16.mxu0 0
    %938 = vmatmul.mubr.bf16.gmra.mxu0 %v875
    %v939 = vpop.f32.mrf.mxu0
    %v940 = vadd.f32 0.0, %v939
    %v941 = vpop.f32.mrf.mxu0
    %v942 = vpop.f32.mrf.mxu0
    %v943 = vadd.f32 0.0, %v942
    %v944 = vpop.f32.mrf.mxu0
    %945 = vmatprep.mubr.bf16.mxu0 0
    %946 = vmatmul.mubr.bf16.gmra.mxu0 %v878
    %v947 = vpop.f32.mrf.mxu0
    %v948 = vadd.f32 0.0, %v947
    %v949 = vpop.f32.mrf.mxu0
    %v950 = vpop.f32.mrf.mxu0
    %v951 = vadd.f32 0.0, %v950
    %v952 = vpop.f32.mrf.mxu0
    %953 = vmatprep.mubr.bf16.mxu0 0
    %954 = vmatmul.mubr.bf16.gmra.mxu0 %v881
    %v955 = vpop.f32.mrf.mxu0
    %v956 = vadd.f32 0.0, %v955
    %v957 = vpop.f32.mrf.mxu0
    %v958 = vpop.f32.mrf.mxu0
    %v959 = vadd.f32 0.0, %v958
    %v960 = vpop.f32.mrf.mxu0
    %961 = vmatprep.mubr.bf16.mxu0 0
    %962 = vmatmul.mubr.bf16.gmra.mxu0 %v884
    %v963 = vpop.f32.mrf.mxu0
    %v964 = vadd.f32 0.0, %v963
    %v965 = vpop.f32.mrf.mxu0
    %v966 = vpop.f32.mrf.mxu0
    %v967 = vadd.f32 0.0, %v966
    %v968 = vpop.f32.mrf.mxu0
    %969 = vmatprep.mubr.bf16.mxu0 0
    %970 = vmatmul.mubr.bf16.gmra.mxu0 %v887
    %v971 = vpop.f32.mrf.mxu0
    %v972 = vadd.f32 0.0, %v971
    %v973 = vpop.f32.mrf.mxu0
    %v974 = vpop.f32.mrf.mxu0
    %v975 = vadd.f32 0.0, %v974
    %v976 = vpop.f32.mrf.mxu0
    %977 = vmatprep.mubr.bf16.mxu0 0
    %978 = vmatmul.mubr.bf16.gmra.mxu0 %v890
    %v979 = vpop.f32.mrf.mxu0
    %v980 = vadd.f32 0.0, %v979
    %v981 = vpop.f32.mrf.mxu0
    %v982 = vpop.f32.mrf.mxu0
    %v983 = vadd.f32 0.0, %v982
    %v984 = vpop.f32.mrf.mxu0
    %985 = vmatprep.mubr.bf16.mxu0 0
    %986 = vmatmul.mubr.bf16.gmra.mxu0 %v893
    %v987 = vpop.f32.mrf.mxu0
    %v988 = vadd.f32 0.0, %v987
    %v989 = vpop.f32.mrf.mxu0
    %v990 = vpop.f32.mrf.mxu0
    %v991 = vadd.f32 0.0, %v990
    %v992 = vpop.f32.mrf.mxu0
    %993 = vmatprep.mubr.bf16.mxu0 0
    %994 = vmatmul.mubr.bf16.gmra.mxu0 %v896
    %v995 = vpop.f32.mrf.mxu0
    %v996 = vadd.f32 0.0, %v995
    %v997 = vpop.f32.mrf.mxu0
    %v998 = vpop.f32.mrf.mxu0
    %v999 = vadd.f32 0.0, %v998
    %v1000 = vpop.f32.mrf.mxu0
    %1001 = vdwg.mxu0
    %v1005 = vunpack.c.l.b16 %v855
    %v1006 = vunpack.c.l.b16 %v856
    %v1007 = vunpack.c.l.b16 %v857
    %v1008 = vpack.c.b16 %v1006, %v1005
    %v1009 = vpack.c.b16 %v1007, %v1007
    %v1012 = vsel %vm385, %v847, 0
    %v1015 = vsel %vm385, %v848, 0
    %v1018 = vsel %vm385, %v849, 0
    %v1021 = vsel %vm385, %v850, 0
    %v1024 = vsel %vm385, %v851, 0
    %v1027 = vsel %vm385, %v852, 0
    %v1030 = vsel %vm385, %v853, 0
    %v1033 = vsel %vm385, %v854, 0
    %vm1035 = vcmask 1041408
    %v1037 = vsel %vm1035, %v1009, 0
    %1039 = vmatprep.subr.bf16.mxu0 0
    %1040 = vmatpush1.bf16.msra.mxu0 0
    %1041 = vmatprep.subr.bf16.mxu0 0
    %1042 = vmatpush1.bf16.msra.mxu0 0
    %1043 = vmatprep.subr.bf16.mxu0 0
    %1044 = vmatpush1.bf16.msra.mxu0 0
    %1045 = vmatprep.subr.bf16.mxu0 0
    %1046 = vmatpush1.bf16.msra.mxu0 0
    %1047 = vmatprep.subr.bf16.mxu0 0
    %1048 = vmatpush1.bf16.msra.mxu0 0
    %1049 = vmatprep.subr.bf16.mxu0 0
    %1050 = vmatpush1.bf16.msra.mxu0 0
    %1051 = vmatprep.subr.bf16.mxu0 0
    %1052 = vmatpush1.bf16.msra.mxu0 %v1037
    %1053 = vmatprep.subr.bf16.mxu0 0
    %1054 = vmatpush1.bf16.msra.mxu0 %v1008
    %1055 = vmatprep.subr.bf16.mxu0 0
    %1056 = vmatpush2.bf16.msra.mxu0 0
    %1057 = vmatprep.subr.bf16.mxu0 0
    %1058 = vmatpush2.bf16.msra.mxu0 0
    %1059 = vmatprep.subr.bf16.mxu0 0
    %1060 = vmatpush2.bf16.msra.mxu0 0
    %1061 = vmatprep.subr.bf16.mxu0 0
    %1062 = vmatpush2.bf16.msra.mxu0 0
    %1063 = vmatprep.subr.bf16.mxu0 0
    %1064 = vmatpush2.bf16.msra.mxu0 0
    %1065 = vmatprep.subr.bf16.mxu0 0
    %1066 = vmatpush2.bf16.msra.mxu0 0
    %1067 = vmatprep.subr.bf16.mxu0 0
    %1068 = vmatpush2.bf16.msra.mxu0 0
    %1069 = vmatprep.subr.bf16.mxu0 0
    %1070 = vmatpush2.bf16.msra.mxu0 0
    %1071 = vmatprep.mubr.bf16.mxu0 0
    %1072 = vmatmul.mubr.bf16.gmra.mxu0 %v1012
    %v1073 = vpop.f32.mrf.mxu0
    %v1074 = vadd.f32 %v940, %v1073
    %v1075 = vpop.f32.mrf.mxu0
    %v1076 = vpop.f32.mrf.mxu0
    %v1077 = vadd.f32 %v943, %v1076
    %v1078 = vpop.f32.mrf.mxu0
    %1079 = vmatprep.mubr.bf16.mxu0 0
    %1080 = vmatmul.mubr.bf16.gmra.mxu0 %v1015
    %v1081 = vpop.f32.mrf.mxu0
    %v1082 = vadd.f32 %v948, %v1081
    %v1083 = vpop.f32.mrf.mxu0
    %v1084 = vpop.f32.mrf.mxu0
    %v1085 = vadd.f32 %v951, %v1084
    %v1086 = vpop.f32.mrf.mxu0
    %1087 = vmatprep.mubr.bf16.mxu0 0
    %1088 = vmatmul.mubr.bf16.gmra.mxu0 %v1018
    %v1089 = vpop.f32.mrf.mxu0
    %v1090 = vadd.f32 %v956, %v1089
    %v1091 = vpop.f32.mrf.mxu0
    %v1092 = vpop.f32.mrf.mxu0
    %v1093 = vadd.f32 %v959, %v1092
    %v1094 = vpop.f32.mrf.mxu0
    %1095 = vmatprep.mubr.bf16.mxu0 0
    %1096 = vmatmul.mubr.bf16.gmra.mxu0 %v1021
    %v1097 = vpop.f32.mrf.mxu0
    %v1098 = vadd.f32 %v964, %v1097
    %v1099 = vpop.f32.mrf.mxu0
    %v1100 = vpop.f32.mrf.mxu0
    %v1101 = vadd.f32 %v967, %v1100
    %v1102 = vpop.f32.mrf.mxu0
    %1103 = vmatprep.mubr.bf16.mxu0 0
    %1104 = vmatmul.mubr.bf16.gmra.mxu0 %v1024
    %v1105 = vpop.f32.mrf.mxu0
    %v1106 = vadd.f32 %v972, %v1105
    %v1107 = vpop.f32.mrf.mxu0
    %v1108 = vpop.f32.mrf.mxu0
    %v1109 = vadd.f32 %v975, %v1108
    %v1110 = vpop.f32.mrf.mxu0
    %1111 = vmatprep.mubr.bf16.mxu0 0
    %1112 = vmatmul.mubr.bf16.gmra.mxu0 %v1027
    %v1113 = vpop.f32.mrf.mxu0
    %v1114 = vadd.f32 %v980, %v1113
    %v1115 = vpop.f32.mrf.mxu0
    %v1116 = vpop.f32.mrf.mxu0
    %v1117 = vadd.f32 %v983, %v1116
    %v1118 = vpop.f32.mrf.mxu0
    %1119 = vmatprep.mubr.bf16.mxu0 0
    %1120 = vmatmul.mubr.bf16.gmra.mxu0 %v1030
    %v1121 = vpop.f32.mrf.mxu0
    %v1122 = vadd.f32 %v988, %v1121
    %v1123 = vpop.f32.mrf.mxu0
    %v1124 = vpop.f32.mrf.mxu0
    %v1125 = vadd.f32 %v991, %v1124
    %v1126 = vpop.f32.mrf.mxu0
    %1127 = vmatprep.mubr.bf16.mxu0 0
    %1128 = vmatmul.mubr.bf16.gmra.mxu0 %v1033
    %v1129 = vpop.f32.mrf.mxu0
    %v1130 = vadd.f32 %v996, %v1129
    %v1131 = vpop.f32.mrf.mxu0
    %v1132 = vpop.f32.mrf.mxu0
    %v1133 = vadd.f32 %v999, %v1132
    %v1134 = vpop.f32.mrf.mxu0
    %1135 = vdwg.mxu0
    %v1136 = vld [vmem:[%s10] sm:$0x1]
    %v1138 = vlaneseq
    %v1139 = vshrl.u32 %v1138, 7
    %v1140 = vsub.s32 0, %v1139
    %v1141 = vrot.slane %v1136, %v1140
    %v1143 = vadd.f32 %v1074, %v1141
    %v1144 = vadd.f32 %v1077, %v1141
    %v1145 = vadd.f32 %v1082, %v1141
    %v1146 = vadd.f32 %v1085, %v1141
    %v1147 = vadd.f32 %v1090, %v1141
    %v1148 = vadd.f32 %v1093, %v1141
    %v1149 = vadd.f32 %v1098, %v1141
    %v1150 = vadd.f32 %v1101, %v1141
    %v1151 = vadd.f32 %v1106, %v1141
    %v1152 = vadd.f32 %v1109, %v1141
    %v1153 = vadd.f32 %v1114, %v1141
    %v1154 = vadd.f32 %v1117, %v1141
    %v1155 = vadd.f32 %v1122, %v1141
    %v1156 = vadd.f32 %v1125, %v1141
    %v1157 = vadd.f32 %v1130, %v1141
    %v1158 = vadd.f32 %v1133, %v1141
    %v1159 = vmax.f32 %v1143, 0.0
    %v1160 = vmax.f32 %v1144, 0.0
    %v1161 = vmax.f32 %v1145, 0.0
    %v1162 = vmax.f32 %v1146, 0.0
    %v1163 = vmax.f32 %v1147, 0.0
    %v1164 = vmax.f32 %v1148, 0.0
    %v1165 = vmax.f32 %v1149, 0.0
    %v1166 = vmax.f32 %v1150, 0.0
    %v1167 = vmax.f32 %v1151, 0.0
    %v1168 = vmax.f32 %v1152, 0.0
    %v1169 = vmax.f32 %v1153, 0.0
    %v1170 = vmax.f32 %v1154, 0.0
    %v1171 = vmax.f32 %v1155, 0.0
    %v1172 = vmax.f32 %v1156, 0.0
    %v1173 = vmax.f32 %v1157, 0.0
    %v1174 = vmax.f32 %v1158, 0.0
    %v1175 = vld [vmem:[%s11] sm:$0x1]
    %v1176 = vld [vmem:[%s12] sm:$0x1]
    %vm1177 = vcmask 261120
    %v1178 = vsel %vm1177, %v1159, 0.0
    %1179 = vadd.xlane.f32.xlu0 %v1178
    %v1180 = vpop.xlane.xlu0 %1179
    %v1181 = vsel %vm1177, %v1160, 0.0
    %1182 = vadd.xlane.f32.xlu0 %v1181
    %v1183 = vpop.xlane.xlu0 %1182
    %v1184 = vsel %vm1177, %v1161, 0.0
    %1185 = vadd.xlane.f32.xlu0 %v1184
    %v1186 = vpop.xlane.xlu0 %1185
    %v1187 = vsel %vm1177, %v1162, 0.0
    %1188 = vadd.xlane.f32.xlu0 %v1187
    %v1189 = vpop.xlane.xlu0 %1188
    %v1190 = vsel %vm1177, %v1163, 0.0
    %1191 = vadd.xlane.f32.xlu0 %v1190
    %v1192 = vpop.xlane.xlu0 %1191
    %v1193 = vsel %vm1177, %v1164, 0.0
    %1194 = vadd.xlane.f32.xlu0 %v1193
    %v1195 = vpop.xlane.xlu0 %1194
    %v1196 = vsel %vm1177, %v1165, 0.0
    %1197 = vadd.xlane.f32.xlu0 %v1196
    %v1198 = vpop.xlane.xlu0 %1197
    %v1199 = vsel %vm1177, %v1166, 0.0
    %1200 = vadd.xlane.f32.xlu0 %v1199
    %v1201 = vpop.xlane.xlu0 %1200
    %v1202 = vsel %vm1177, %v1167, 0.0
    %1203 = vadd.xlane.f32.xlu0 %v1202
    %v1204 = vpop.xlane.xlu0 %1203
    %v1205 = vsel %vm1177, %v1168, 0.0
    %1206 = vadd.xlane.f32.xlu0 %v1205
    %v1207 = vpop.xlane.xlu0 %1206
    %v1208 = vsel %vm1177, %v1169, 0.0
    %1209 = vadd.xlane.f32.xlu0 %v1208
    %v1210 = vpop.xlane.xlu0 %1209
    %v1211 = vsel %vm1177, %v1170, 0.0
    %1212 = vadd.xlane.f32.xlu0 %v1211
    %v1213 = vpop.xlane.xlu0 %1212
    %v1214 = vsel %vm1177, %v1171, 0.0
    %1215 = vadd.xlane.f32.xlu0 %v1214
    %v1216 = vpop.xlane.xlu0 %1215
    %v1217 = vsel %vm1177, %v1172, 0.0
    %1218 = vadd.xlane.f32.xlu0 %v1217
    %v1219 = vpop.xlane.xlu0 %1218
    %v1220 = vsel %vm1177, %v1173, 0.0
    %1221 = vadd.xlane.f32.xlu0 %v1220
    %v1222 = vpop.xlane.xlu0 %1221
    %v1223 = vsel %vm1177, %v1174, 0.0
    %1224 = vadd.xlane.f32.xlu0 %v1223
    %v1225 = vpop.xlane.xlu0 %1224
    %v1226 = vrcp.pop 32.0
    %v1227 = vmul.f32 %v1180, %v1226
    %v1228 = vmul.f32 %v1183, %v1226
    %v1229 = vmul.f32 %v1186, %v1226
    %v1230 = vmul.f32 %v1189, %v1226
    %v1231 = vmul.f32 %v1192, %v1226
    %v1232 = vmul.f32 %v1195, %v1226
    %v1233 = vmul.f32 %v1198, %v1226
    %v1234 = vmul.f32 %v1201, %v1226
    %v1235 = vmul.f32 %v1204, %v1226
    %v1236 = vmul.f32 %v1207, %v1226
    %v1237 = vmul.f32 %v1210, %v1226
    %v1238 = vmul.f32 %v1213, %v1226
    %v1239 = vmul.f32 %v1216, %v1226
    %v1240 = vmul.f32 %v1219, %v1226
    %v1241 = vmul.f32 %v1222, %v1226
    %v1242 = vmul.f32 %v1225, %v1226
    %v1243 = vsub.f32 %v1159, %v1227
    %v1244 = vsub.f32 %v1160, %v1228
    %v1245 = vsub.f32 %v1161, %v1229
    %v1246 = vsub.f32 %v1162, %v1230
    %v1247 = vsub.f32 %v1163, %v1231
    %v1248 = vsub.f32 %v1164, %v1232
    %v1249 = vsub.f32 %v1165, %v1233
    %v1250 = vsub.f32 %v1166, %v1234
    %v1251 = vsub.f32 %v1167, %v1235
    %v1252 = vsub.f32 %v1168, %v1236
    %v1253 = vsub.f32 %v1169, %v1237
    %v1254 = vsub.f32 %v1170, %v1238
    %v1255 = vsub.f32 %v1171, %v1239
    %v1256 = vsub.f32 %v1172, %v1240
    %v1257 = vsub.f32 %v1173, %v1241
    %v1258 = vsub.f32 %v1174, %v1242
    %v1259 = vmul.f32 %v1243, %v1243
    %v1260 = vmul.f32 %v1244, %v1244
    %v1261 = vmul.f32 %v1245, %v1245
    %v1262 = vmul.f32 %v1246, %v1246
    %v1263 = vmul.f32 %v1247, %v1247
    %v1264 = vmul.f32 %v1248, %v1248
    %v1265 = vmul.f32 %v1249, %v1249
    %v1266 = vmul.f32 %v1250, %v1250
    %v1267 = vmul.f32 %v1251, %v1251
    %v1268 = vmul.f32 %v1252, %v1252
    %v1269 = vmul.f32 %v1253, %v1253
    %v1270 = vmul.f32 %v1254, %v1254
    %v1271 = vmul.f32 %v1255, %v1255
    %v1272 = vmul.f32 %v1256, %v1256
    %v1273 = vmul.f32 %v1257, %v1257
    %v1274 = vmul.f32 %v1258, %v1258
    %v1275 = vsel %vm1177, %v1259, 0.0
    %1276 = vadd.xlane.f32.xlu0 %v1275
    %v1277 = vpop.xlane.xlu0 %1276
    %v1278 = vsel %vm1177, %v1260, 0.0
    %1279 = vadd.xlane.f32.xlu0 %v1278
    %v1280 = vpop.xlane.xlu0 %1279
    %v1281 = vsel %vm1177, %v1261, 0.0
    %1282 = vadd.xlane.f32.xlu0 %v1281
    %v1283 = vpop.xlane.xlu0 %1282
    %v1284 = vsel %vm1177, %v1262, 0.0
    %1285 = vadd.xlane.f32.xlu0 %v1284
    %v1286 = vpop.xlane.xlu0 %1285
    %v1287 = vsel %vm1177, %v1263, 0.0
    %1288 = vadd.xlane.f32.xlu0 %v1287
    %v1289 = vpop.xlane.xlu0 %1288
    %v1290 = vsel %vm1177, %v1264, 0.0
    %1291 = vadd.xlane.f32.xlu0 %v1290
    %v1292 = vpop.xlane.xlu0 %1291
    %v1293 = vsel %vm1177, %v1265, 0.0
    %1294 = vadd.xlane.f32.xlu0 %v1293
    %v1295 = vpop.xlane.xlu0 %1294
    %v1296 = vsel %vm1177, %v1266, 0.0
    %1297 = vadd.xlane.f32.xlu0 %v1296
    %v1298 = vpop.xlane.xlu0 %1297
    %v1299 = vsel %vm1177, %v1267, 0.0
    %1300 = vadd.xlane.f32.xlu0 %v1299
    %v1301 = vpop.xlane.xlu0 %1300
    %v1302 = vsel %vm1177, %v1268, 0.0
    %1303 = vadd.xlane.f32.xlu0 %v1302
    %v1304 = vpop.xlane.xlu0 %1303
    %v1305 = vsel %vm1177, %v1269, 0.0
    %1306 = vadd.xlane.f32.xlu0 %v1305
    %v1307 = vpop.xlane.xlu0 %1306
    %v1308 = vsel %vm1177, %v1270, 0.0
    %1309 = vadd.xlane.f32.xlu0 %v1308
    %v1310 = vpop.xlane.xlu0 %1309
    %v1311 = vsel %vm1177, %v1271, 0.0
    %1312 = vadd.xlane.f32.xlu0 %v1311
    %v1313 = vpop.xlane.xlu0 %1312
    %v1314 = vsel %vm1177, %v1272, 0.0
    %1315 = vadd.xlane.f32.xlu0 %v1314
    %v1316 = vpop.xlane.xlu0 %1315
    %v1317 = vsel %vm1177, %v1273, 0.0
    %1318 = vadd.xlane.f32.xlu0 %v1317
    %v1319 = vpop.xlane.xlu0 %1318
    %v1320 = vsel %vm1177, %v1274, 0.0
    %1321 = vadd.xlane.f32.xlu0 %v1320
    %v1322 = vpop.xlane.xlu0 %1321
    %v1323 = vmul.f32 %v1277, %v1226
    %v1324 = vmul.f32 %v1280, %v1226
    %v1325 = vmul.f32 %v1283, %v1226
    %v1326 = vmul.f32 %v1286, %v1226
    %v1327 = vmul.f32 %v1289, %v1226
    %v1328 = vmul.f32 %v1292, %v1226
    %v1329 = vmul.f32 %v1295, %v1226
    %v1330 = vmul.f32 %v1298, %v1226
    %v1331 = vmul.f32 %v1301, %v1226
    %v1332 = vmul.f32 %v1304, %v1226
    %v1333 = vmul.f32 %v1307, %v1226
    %v1334 = vmul.f32 %v1310, %v1226
    %v1335 = vmul.f32 %v1313, %v1226
    %v1336 = vmul.f32 %v1316, %v1226
    %v1337 = vmul.f32 %v1319, %v1226
    %v1338 = vmul.f32 %v1322, %v1226
    %v1339 = vadd.f32 %v1323, 1e-05
    %v1340 = vadd.f32 %v1324, 1e-05
    %v1341 = vadd.f32 %v1325, 1e-05
    %v1342 = vadd.f32 %v1326, 1e-05
    %v1343 = vadd.f32 %v1327, 1e-05
    %v1344 = vadd.f32 %v1328, 1e-05
    %v1345 = vadd.f32 %v1329, 1e-05
    %v1346 = vadd.f32 %v1330, 1e-05
    %v1347 = vadd.f32 %v1331, 1e-05
    %v1348 = vadd.f32 %v1332, 1e-05
    %v1349 = vadd.f32 %v1333, 1e-05
    %v1350 = vadd.f32 %v1334, 1e-05
    %v1351 = vadd.f32 %v1335, 1e-05
    %v1352 = vadd.f32 %v1336, 1e-05
    %v1353 = vadd.f32 %v1337, 1e-05
    %v1354 = vadd.f32 %v1338, 1e-05
    %v1355 = vrsqrt.pop %v1339
    %v1356 = vrsqrt.pop %v1340
    %v1357 = vrsqrt.pop %v1341
    %v1358 = vrsqrt.pop %v1342
    %v1359 = vrsqrt.pop %v1343
    %v1360 = vrsqrt.pop %v1344
    %v1361 = vrsqrt.pop %v1345
    %v1362 = vrsqrt.pop %v1346
    %v1363 = vrsqrt.pop %v1347
    %v1364 = vrsqrt.pop %v1348
    %v1365 = vrsqrt.pop %v1349
    %v1366 = vrsqrt.pop %v1350
    %v1367 = vrsqrt.pop %v1351
    %v1368 = vrsqrt.pop %v1352
    %v1369 = vrsqrt.pop %v1353
    %v1370 = vrsqrt.pop %v1354
    %v1371 = vmul.f32 %v1243, %v1355
    %v1372 = vmul.f32 %v1244, %v1356
    %v1373 = vmul.f32 %v1245, %v1357
    %v1374 = vmul.f32 %v1246, %v1358
    %v1375 = vmul.f32 %v1247, %v1359
    %v1376 = vmul.f32 %v1248, %v1360
    %v1377 = vmul.f32 %v1249, %v1361
    %v1378 = vmul.f32 %v1250, %v1362
    %v1379 = vmul.f32 %v1251, %v1363
    %v1380 = vmul.f32 %v1252, %v1364
    %v1381 = vmul.f32 %v1253, %v1365
    %v1382 = vmul.f32 %v1254, %v1366
    %v1383 = vmul.f32 %v1255, %v1367
    %v1384 = vmul.f32 %v1256, %v1368
    %v1385 = vmul.f32 %v1257, %v1369
    %v1386 = vmul.f32 %v1258, %v1370
    %v1388 = vlaneseq
    %v1389 = vshrl.u32 %v1388, 7
    %v1390 = vsub.s32 0, %v1389
    %v1391 = vrot.slane %v1175, %v1390
    %v1393 = vmul.f32 %v1371, %v1391
    %v1394 = vmul.f32 %v1372, %v1391
    %v1395 = vmul.f32 %v1373, %v1391
    %v1396 = vmul.f32 %v1374, %v1391
    %v1397 = vmul.f32 %v1375, %v1391
    %v1398 = vmul.f32 %v1376, %v1391
    %v1399 = vmul.f32 %v1377, %v1391
    %v1400 = vmul.f32 %v1378, %v1391
    %v1401 = vmul.f32 %v1379, %v1391
    %v1402 = vmul.f32 %v1380, %v1391
    %v1403 = vmul.f32 %v1381, %v1391
    %v1404 = vmul.f32 %v1382, %v1391
    %v1405 = vmul.f32 %v1383, %v1391
    %v1406 = vmul.f32 %v1384, %v1391
    %v1407 = vmul.f32 %v1385, %v1391
    %v1408 = vmul.f32 %v1386, %v1391
    %v1410 = vlaneseq
    %v1411 = vshrl.u32 %v1410, 7
    %v1412 = vsub.s32 0, %v1411
    %v1413 = vrot.slane %v1176, %v1412
    %v1415 = vadd.f32 %v1393, %v1413
    %v1416 = vadd.f32 %v1394, %v1413
    %v1417 = vadd.f32 %v1395, %v1413
    %v1418 = vadd.f32 %v1396, %v1413
    %v1419 = vadd.f32 %v1397, %v1413
    %v1420 = vadd.f32 %v1398, %v1413
    %v1421 = vadd.f32 %v1399, %v1413
    %v1422 = vadd.f32 %v1400, %v1413
    %v1423 = vadd.f32 %v1401, %v1413
    %v1424 = vadd.f32 %v1402, %v1413
    %v1425 = vadd.f32 %v1403, %v1413
    %v1426 = vadd.f32 %v1404, %v1413
    %v1427 = vadd.f32 %v1405, %v1413
    %v1428 = vadd.f32 %v1406, %v1413
    %v1429 = vadd.f32 %v1407, %v1413
    %v1430 = vadd.f32 %v1408, %v1413
    %v1431 = vpack.c.bf16 %v1416, %v1415
    %v1432 = vpack.c.bf16 %v1418, %v1417
    %v1433 = vpack.c.bf16 %v1420, %v1419
    %v1434 = vpack.c.bf16 %v1422, %v1421
    %v1435 = vpack.c.bf16 %v1424, %v1423
    %v1436 = vpack.c.bf16 %v1426, %v1425
    %v1437 = vpack.c.bf16 %v1428, %v1427
    %v1438 = vpack.c.bf16 %v1430, %v1429
    %v1439 = vld [vmem:[%s13] sm:$0xf]
    %v1440 = vld [vmem:[%s13 + $0x4] sm:$0xf]
    %v1441 = vld [vmem:[%s13 + $0x8] sm:$0xf]
    %v1442 = vld [vmem:[%s13 + $0xc] sm:$0xf]
    %v1443 = vld [vmem:[%s14] sm:$0x1]
    %v1445 = vlaneseq
    %v1446 = vshrl.u32 %v1445, 7
    %v1447 = vsub.s32 0, %v1446
    %v1448 = vrot.slane %v1443, %v1447
    %v1454 = vunpack.c.l.b16 %v1439
    %v1455 = vunpack.c.l.b16 %v1440
    %v1456 = vunpack.c.l.b16 %v1441
    %v1457 = vunpack.c.l.b16 %v1442
    %v1458 = vpack.c.b16 %v1455, %v1454
    %v1459 = vpack.c.b16 %v1457, %v1456
    %v1463 = vsel %vm1177, %v1431, 0
    %v1466 = vsel %vm1177, %v1432, 0
    %v1469 = vsel %vm1177, %v1433, 0
    %v1472 = vsel %vm1177, %v1434, 0
    %v1475 = vsel %vm1177, %v1435, 0
    %v1478 = vsel %vm1177, %v1436, 0
    %v1481 = vsel %vm1177, %v1437, 0
    %v1484 = vsel %vm1177, %v1438, 0
    %1486 = vmatprep.subr.bf16.mxu0 0
    %1487 = vmatpush1.bf16.msra.mxu0 0
    %1488 = vmatprep.subr.bf16.mxu0 0
    %1489 = vmatpush1.bf16.msra.mxu0 0
    %1490 = vmatprep.subr.bf16.mxu0 0
    %1491 = vmatpush1.bf16.msra.mxu0 0
    %1492 = vmatprep.subr.bf16.mxu0 0
    %1493 = vmatpush1.bf16.msra.mxu0 0
    %1494 = vmatprep.subr.bf16.mxu0 0
    %1495 = vmatpush1.bf16.msra.mxu0 0
    %1496 = vmatprep.subr.bf16.mxu0 0
    %1497 = vmatpush1.bf16.msra.mxu0 0
    %1498 = vmatprep.subr.bf16.mxu0 0
    %1499 = vmatpush1.bf16.msra.mxu0 %v1459
    %1500 = vmatprep.subr.bf16.mxu0 0
    %1501 = vmatpush1.bf16.msra.mxu0 %v1458
    %1502 = vmatprep.subr.bf16.mxu0 0
    %1503 = vmatpush2.bf16.msra.mxu0 0
    %1504 = vmatprep.subr.bf16.mxu0 0
    %1505 = vmatpush2.bf16.msra.mxu0 0
    %1506 = vmatprep.subr.bf16.mxu0 0
    %1507 = vmatpush2.bf16.msra.mxu0 0
    %1508 = vmatprep.subr.bf16.mxu0 0
    %1509 = vmatpush2.bf16.msra.mxu0 0
    %1510 = vmatprep.subr.bf16.mxu0 0
    %1511 = vmatpush2.bf16.msra.mxu0 0
    %1512 = vmatprep.subr.bf16.mxu0 0
    %1513 = vmatpush2.bf16.msra.mxu0 0
    %1514 = vmatprep.subr.bf16.mxu0 0
    %1515 = vmatpush2.bf16.msra.mxu0 0
    %1516 = vmatprep.subr.bf16.mxu0 0
    %1517 = vmatpush2.bf16.msra.mxu0 0
    %1518 = vmatprep.mubr.bf16.mxu0 0
    %1519 = vmatmul.mubr.bf16.gmra.mxu0 %v1463
    %v1520 = vpop.f32.mrf.mxu0
    %v1521 = vadd.f32 %v1448, %v1520
    %v1522 = vpop.f32.mrf.mxu0
    %v1523 = vpop.f32.mrf.mxu0
    %v1524 = vadd.f32 %v1448, %v1523
    %v1525 = vpop.f32.mrf.mxu0
    %1526 = vmatprep.mubr.bf16.mxu0 0
    %1527 = vmatmul.mubr.bf16.gmra.mxu0 %v1466
    %v1528 = vpop.f32.mrf.mxu0
    %v1529 = vadd.f32 %v1448, %v1528
    %v1530 = vpop.f32.mrf.mxu0
    %v1531 = vpop.f32.mrf.mxu0
    %v1532 = vadd.f32 %v1448, %v1531
    %v1533 = vpop.f32.mrf.mxu0
    %1534 = vmatprep.mubr.bf16.mxu0 0
    %1535 = vmatmul.mubr.bf16.gmra.mxu0 %v1469
    %v1536 = vpop.f32.mrf.mxu0
    %v1537 = vadd.f32 %v1448, %v1536
    %v1538 = vpop.f32.mrf.mxu0
    %v1539 = vpop.f32.mrf.mxu0
    %v1540 = vadd.f32 %v1448, %v1539
    %v1541 = vpop.f32.mrf.mxu0
    %1542 = vmatprep.mubr.bf16.mxu0 0
    %1543 = vmatmul.mubr.bf16.gmra.mxu0 %v1472
    %v1544 = vpop.f32.mrf.mxu0
    %v1545 = vadd.f32 %v1448, %v1544
    %v1546 = vpop.f32.mrf.mxu0
    %v1547 = vpop.f32.mrf.mxu0
    %v1548 = vadd.f32 %v1448, %v1547
    %v1549 = vpop.f32.mrf.mxu0
    %1550 = vmatprep.mubr.bf16.mxu0 0
    %1551 = vmatmul.mubr.bf16.gmra.mxu0 %v1475
    %v1552 = vpop.f32.mrf.mxu0
    %v1553 = vadd.f32 %v1448, %v1552
    %v1554 = vpop.f32.mrf.mxu0
    %v1555 = vpop.f32.mrf.mxu0
    %v1556 = vadd.f32 %v1448, %v1555
    %v1557 = vpop.f32.mrf.mxu0
    %1558 = vmatprep.mubr.bf16.mxu0 0
    %1559 = vmatmul.mubr.bf16.gmra.mxu0 %v1478
    %v1560 = vpop.f32.mrf.mxu0
    %v1561 = vadd.f32 %v1448, %v1560
    %v1562 = vpop.f32.mrf.mxu0
    %v1563 = vpop.f32.mrf.mxu0
    %v1564 = vadd.f32 %v1448, %v1563
    %v1565 = vpop.f32.mrf.mxu0
    %1566 = vmatprep.mubr.bf16.mxu0 0
    %1567 = vmatmul.mubr.bf16.gmra.mxu0 %v1481
    %v1568 = vpop.f32.mrf.mxu0
    %v1569 = vadd.f32 %v1448, %v1568
    %v1570 = vpop.f32.mrf.mxu0
    %v1571 = vpop.f32.mrf.mxu0
    %v1572 = vadd.f32 %v1448, %v1571
    %v1573 = vpop.f32.mrf.mxu0
    %1574 = vmatprep.mubr.bf16.mxu0 0
    %1575 = vmatmul.mubr.bf16.gmra.mxu0 %v1484
    %v1576 = vpop.f32.mrf.mxu0
    %v1577 = vadd.f32 %v1448, %v1576
    %v1578 = vpop.f32.mrf.mxu0
    %v1579 = vpop.f32.mrf.mxu0
    %v1580 = vadd.f32 %v1448, %v1579
    %v1581 = vpop.f32.mrf.mxu0
    %1582 = vdwg.mxu0
    %v1583 = vmax.f32 %v1521, 0.0
    %v1584 = vmax.f32 %v1524, 0.0
    %v1585 = vmax.f32 %v1529, 0.0
    %v1586 = vmax.f32 %v1532, 0.0
    %v1587 = vmax.f32 %v1537, 0.0
    %v1588 = vmax.f32 %v1540, 0.0
    %v1589 = vmax.f32 %v1545, 0.0
    %v1590 = vmax.f32 %v1548, 0.0
    %v1591 = vmax.f32 %v1553, 0.0
    %v1592 = vmax.f32 %v1556, 0.0
    %v1593 = vmax.f32 %v1561, 0.0
    %v1594 = vmax.f32 %v1564, 0.0
    %v1595 = vmax.f32 %v1569, 0.0
    %v1596 = vmax.f32 %v1572, 0.0
    %v1597 = vmax.f32 %v1577, 0.0
    %v1598 = vmax.f32 %v1580, 0.0
    %v1599 = vld [vmem:[%s15] sm:$0x1]
    %v1600 = vld [vmem:[%s16] sm:$0x1]
    %v1601 = vsel %vm1177, %v1583, 0.0
    %1602 = vadd.xlane.f32.xlu0 %v1601
    %v1603 = vpop.xlane.xlu0 %1602
    %v1604 = vsel %vm1177, %v1584, 0.0
    %1605 = vadd.xlane.f32.xlu0 %v1604
    %v1606 = vpop.xlane.xlu0 %1605
    %v1607 = vsel %vm1177, %v1585, 0.0
    %1608 = vadd.xlane.f32.xlu0 %v1607
    %v1609 = vpop.xlane.xlu0 %1608
    %v1610 = vsel %vm1177, %v1586, 0.0
    %1611 = vadd.xlane.f32.xlu0 %v1610
    %v1612 = vpop.xlane.xlu0 %1611
    %v1613 = vsel %vm1177, %v1587, 0.0
    %1614 = vadd.xlane.f32.xlu0 %v1613
    %v1615 = vpop.xlane.xlu0 %1614
    %v1616 = vsel %vm1177, %v1588, 0.0
    %1617 = vadd.xlane.f32.xlu0 %v1616
    %v1618 = vpop.xlane.xlu0 %1617
    %v1619 = vsel %vm1177, %v1589, 0.0
    %1620 = vadd.xlane.f32.xlu0 %v1619
    %v1621 = vpop.xlane.xlu0 %1620
    %v1622 = vsel %vm1177, %v1590, 0.0
    %1623 = vadd.xlane.f32.xlu0 %v1622
    %v1624 = vpop.xlane.xlu0 %1623
    %v1625 = vsel %vm1177, %v1591, 0.0
    %1626 = vadd.xlane.f32.xlu0 %v1625
    %v1627 = vpop.xlane.xlu0 %1626
    %v1628 = vsel %vm1177, %v1592, 0.0
    %1629 = vadd.xlane.f32.xlu0 %v1628
    %v1630 = vpop.xlane.xlu0 %1629
    %v1631 = vsel %vm1177, %v1593, 0.0
    %1632 = vadd.xlane.f32.xlu0 %v1631
    %v1633 = vpop.xlane.xlu0 %1632
    %v1634 = vsel %vm1177, %v1594, 0.0
    %1635 = vadd.xlane.f32.xlu0 %v1634
    %v1636 = vpop.xlane.xlu0 %1635
    %v1637 = vsel %vm1177, %v1595, 0.0
    %1638 = vadd.xlane.f32.xlu0 %v1637
    %v1639 = vpop.xlane.xlu0 %1638
    %v1640 = vsel %vm1177, %v1596, 0.0
    %1641 = vadd.xlane.f32.xlu0 %v1640
    %v1642 = vpop.xlane.xlu0 %1641
    %v1643 = vsel %vm1177, %v1597, 0.0
    %1644 = vadd.xlane.f32.xlu0 %v1643
    %v1645 = vpop.xlane.xlu0 %1644
    %v1646 = vsel %vm1177, %v1598, 0.0
    %1647 = vadd.xlane.f32.xlu0 %v1646
    %v1648 = vpop.xlane.xlu0 %1647
    %v1649 = vmul.f32 %v1603, %v1226
    %v1650 = vmul.f32 %v1606, %v1226
    %v1651 = vmul.f32 %v1609, %v1226
    %v1652 = vmul.f32 %v1612, %v1226
    %v1653 = vmul.f32 %v1615, %v1226
    %v1654 = vmul.f32 %v1618, %v1226
    %v1655 = vmul.f32 %v1621, %v1226
    %v1656 = vmul.f32 %v1624, %v1226
    %v1657 = vmul.f32 %v1627, %v1226
    %v1658 = vmul.f32 %v1630, %v1226
    %v1659 = vmul.f32 %v1633, %v1226
    %v1660 = vmul.f32 %v1636, %v1226
    %v1661 = vmul.f32 %v1639, %v1226
    %v1662 = vmul.f32 %v1642, %v1226
    %v1663 = vmul.f32 %v1645, %v1226
    %v1664 = vmul.f32 %v1648, %v1226
    %v1665 = vsub.f32 %v1583, %v1649
    %v1666 = vsub.f32 %v1584, %v1650
    %v1667 = vsub.f32 %v1585, %v1651
    %v1668 = vsub.f32 %v1586, %v1652
    %v1669 = vsub.f32 %v1587, %v1653
    %v1670 = vsub.f32 %v1588, %v1654
    %v1671 = vsub.f32 %v1589, %v1655
    %v1672 = vsub.f32 %v1590, %v1656
    %v1673 = vsub.f32 %v1591, %v1657
    %v1674 = vsub.f32 %v1592, %v1658
    %v1675 = vsub.f32 %v1593, %v1659
    %v1676 = vsub.f32 %v1594, %v1660
    %v1677 = vsub.f32 %v1595, %v1661
    %v1678 = vsub.f32 %v1596, %v1662
    %v1679 = vsub.f32 %v1597, %v1663
    %v1680 = vsub.f32 %v1598, %v1664
    %v1681 = vmul.f32 %v1665, %v1665
    %v1682 = vmul.f32 %v1666, %v1666
    %v1683 = vmul.f32 %v1667, %v1667
    %v1684 = vmul.f32 %v1668, %v1668
    %v1685 = vmul.f32 %v1669, %v1669
    %v1686 = vmul.f32 %v1670, %v1670
    %v1687 = vmul.f32 %v1671, %v1671
    %v1688 = vmul.f32 %v1672, %v1672
    %v1689 = vmul.f32 %v1673, %v1673
    %v1690 = vmul.f32 %v1674, %v1674
    %v1691 = vmul.f32 %v1675, %v1675
    %v1692 = vmul.f32 %v1676, %v1676
    %v1693 = vmul.f32 %v1677, %v1677
    %v1694 = vmul.f32 %v1678, %v1678
    %v1695 = vmul.f32 %v1679, %v1679
    %v1696 = vmul.f32 %v1680, %v1680
    %v1697 = vsel %vm1177, %v1681, 0.0
    %1698 = vadd.xlane.f32.xlu0 %v1697
    %v1699 = vpop.xlane.xlu0 %1698
    %v1700 = vsel %vm1177, %v1682, 0.0
    %1701 = vadd.xlane.f32.xlu0 %v1700
    %v1702 = vpop.xlane.xlu0 %1701
    %v1703 = vsel %vm1177, %v1683, 0.0
    %1704 = vadd.xlane.f32.xlu0 %v1703
    %v1705 = vpop.xlane.xlu0 %1704
    %v1706 = vsel %vm1177, %v1684, 0.0
    %1707 = vadd.xlane.f32.xlu0 %v1706
    %v1708 = vpop.xlane.xlu0 %1707
    %v1709 = vsel %vm1177, %v1685, 0.0
    %1710 = vadd.xlane.f32.xlu0 %v1709
    %v1711 = vpop.xlane.xlu0 %1710
    %v1712 = vsel %vm1177, %v1686, 0.0
    %1713 = vadd.xlane.f32.xlu0 %v1712
    %v1714 = vpop.xlane.xlu0 %1713
    %v1715 = vsel %vm1177, %v1687, 0.0
    %1716 = vadd.xlane.f32.xlu0 %v1715
    %v1717 = vpop.xlane.xlu0 %1716
    %v1718 = vsel %vm1177, %v1688, 0.0
    %1719 = vadd.xlane.f32.xlu0 %v1718
    %v1720 = vpop.xlane.xlu0 %1719
    %v1721 = vsel %vm1177, %v1689, 0.0
    %1722 = vadd.xlane.f32.xlu0 %v1721
    %v1723 = vpop.xlane.xlu0 %1722
    %v1724 = vsel %vm1177, %v1690, 0.0
    %1725 = vadd.xlane.f32.xlu0 %v1724
    %v1726 = vpop.xlane.xlu0 %1725
    %v1727 = vsel %vm1177, %v1691, 0.0
    %1728 = vadd.xlane.f32.xlu0 %v1727
    %v1729 = vpop.xlane.xlu0 %1728
    %v1730 = vsel %vm1177, %v1692, 0.0
    %1731 = vadd.xlane.f32.xlu0 %v1730
    %v1732 = vpop.xlane.xlu0 %1731
    %v1733 = vsel %vm1177, %v1693, 0.0
    %1734 = vadd.xlane.f32.xlu0 %v1733
    %v1735 = vpop.xlane.xlu0 %1734
    %v1736 = vsel %vm1177, %v1694, 0.0
    %1737 = vadd.xlane.f32.xlu0 %v1736
    %v1738 = vpop.xlane.xlu0 %1737
    %v1739 = vsel %vm1177, %v1695, 0.0
    %1740 = vadd.xlane.f32.xlu0 %v1739
    %v1741 = vpop.xlane.xlu0 %1740
    %v1742 = vsel %vm1177, %v1696, 0.0
    %1743 = vadd.xlane.f32.xlu0 %v1742
    %v1744 = vpop.xlane.xlu0 %1743
    %v1745 = vmul.f32 %v1699, %v1226
    %v1746 = vmul.f32 %v1702, %v1226
    %v1747 = vmul.f32 %v1705, %v1226
    %v1748 = vmul.f32 %v1708, %v1226
    %v1749 = vmul.f32 %v1711, %v1226
    %v1750 = vmul.f32 %v1714, %v1226
    %v1751 = vmul.f32 %v1717, %v1226
    %v1752 = vmul.f32 %v1720, %v1226
    %v1753 = vmul.f32 %v1723, %v1226
    %v1754 = vmul.f32 %v1726, %v1226
    %v1755 = vmul.f32 %v1729, %v1226
    %v1756 = vmul.f32 %v1732, %v1226
    %v1757 = vmul.f32 %v1735, %v1226
    %v1758 = vmul.f32 %v1738, %v1226
    %v1759 = vmul.f32 %v1741, %v1226
    %v1760 = vmul.f32 %v1744, %v1226
    %v1761 = vadd.f32 %v1745, 1e-05
    %v1762 = vadd.f32 %v1746, 1e-05
    %v1763 = vadd.f32 %v1747, 1e-05
    %v1764 = vadd.f32 %v1748, 1e-05
    %v1765 = vadd.f32 %v1749, 1e-05
    %v1766 = vadd.f32 %v1750, 1e-05
    %v1767 = vadd.f32 %v1751, 1e-05
    %v1768 = vadd.f32 %v1752, 1e-05
    %v1769 = vadd.f32 %v1753, 1e-05
    %v1770 = vadd.f32 %v1754, 1e-05
    %v1771 = vadd.f32 %v1755, 1e-05
    %v1772 = vadd.f32 %v1756, 1e-05
    %v1773 = vadd.f32 %v1757, 1e-05
    %v1774 = vadd.f32 %v1758, 1e-05
    %v1775 = vadd.f32 %v1759, 1e-05
    %v1776 = vadd.f32 %v1760, 1e-05
    %v1777 = vrsqrt.pop %v1761
    %v1778 = vrsqrt.pop %v1762
    %v1779 = vrsqrt.pop %v1763
    %v1780 = vrsqrt.pop %v1764
    %v1781 = vrsqrt.pop %v1765
    %v1782 = vrsqrt.pop %v1766
    %v1783 = vrsqrt.pop %v1767
    %v1784 = vrsqrt.pop %v1768
    %v1785 = vrsqrt.pop %v1769
    %v1786 = vrsqrt.pop %v1770
    %v1787 = vrsqrt.pop %v1771
    %v1788 = vrsqrt.pop %v1772
    %v1789 = vrsqrt.pop %v1773
    %v1790 = vrsqrt.pop %v1774
    %v1791 = vrsqrt.pop %v1775
    %v1792 = vrsqrt.pop %v1776
    %v1793 = vmul.f32 %v1665, %v1777
    %v1794 = vmul.f32 %v1666, %v1778
    %v1795 = vmul.f32 %v1667, %v1779
    %v1796 = vmul.f32 %v1668, %v1780
    %v1797 = vmul.f32 %v1669, %v1781
    %v1798 = vmul.f32 %v1670, %v1782
    %v1799 = vmul.f32 %v1671, %v1783
    %v1800 = vmul.f32 %v1672, %v1784
    %v1801 = vmul.f32 %v1673, %v1785
    %v1802 = vmul.f32 %v1674, %v1786
    %v1803 = vmul.f32 %v1675, %v1787
    %v1804 = vmul.f32 %v1676, %v1788
    %v1805 = vmul.f32 %v1677, %v1789
    %v1806 = vmul.f32 %v1678, %v1790
    %v1807 = vmul.f32 %v1679, %v1791
    %v1808 = vmul.f32 %v1680, %v1792
    %v1810 = vlaneseq
    %v1811 = vshrl.u32 %v1810, 7
    %v1812 = vsub.s32 0, %v1811
    %v1813 = vrot.slane %v1599, %v1812
    %v1815 = vmul.f32 %v1793, %v1813
    %v1816 = vmul.f32 %v1794, %v1813
    %v1817 = vmul.f32 %v1795, %v1813
    %v1818 = vmul.f32 %v1796, %v1813
    %v1819 = vmul.f32 %v1797, %v1813
    %v1820 = vmul.f32 %v1798, %v1813
    %v1821 = vmul.f32 %v1799, %v1813
    %v1822 = vmul.f32 %v1800, %v1813
    %v1823 = vmul.f32 %v1801, %v1813
    %v1824 = vmul.f32 %v1802, %v1813
    %v1825 = vmul.f32 %v1803, %v1813
    %v1826 = vmul.f32 %v1804, %v1813
    %v1827 = vmul.f32 %v1805, %v1813
    %v1828 = vmul.f32 %v1806, %v1813
    %v1829 = vmul.f32 %v1807, %v1813
    %v1830 = vmul.f32 %v1808, %v1813
    %v1832 = vlaneseq
    %v1833 = vshrl.u32 %v1832, 7
    %v1834 = vsub.s32 0, %v1833
    %v1835 = vrot.slane %v1600, %v1834
    %v1837 = vadd.f32 %v1815, %v1835
    %v1838 = vadd.f32 %v1816, %v1835
    %v1839 = vadd.f32 %v1817, %v1835
    %v1840 = vadd.f32 %v1818, %v1835
    %v1841 = vadd.f32 %v1819, %v1835
    %v1842 = vadd.f32 %v1820, %v1835
    %v1843 = vadd.f32 %v1821, %v1835
    %v1844 = vadd.f32 %v1822, %v1835
    %v1845 = vadd.f32 %v1823, %v1835
    %v1846 = vadd.f32 %v1824, %v1835
    %v1847 = vadd.f32 %v1825, %v1835
    %v1848 = vadd.f32 %v1826, %v1835
    %v1849 = vadd.f32 %v1827, %v1835
    %v1850 = vadd.f32 %v1828, %v1835
    %v1851 = vadd.f32 %v1829, %v1835
    %v1852 = vadd.f32 %v1830, %v1835
    %v1853 = vpack.c.bf16 %v1838, %v1837
    %v1854 = vpack.c.bf16 %v1840, %v1839
    %v1855 = vpack.c.bf16 %v1842, %v1841
    %v1856 = vpack.c.bf16 %v1844, %v1843
    %v1857 = vpack.c.bf16 %v1846, %v1845
    %v1858 = vpack.c.bf16 %v1848, %v1847
    %v1859 = vpack.c.bf16 %v1850, %v1849
    %v1860 = vpack.c.bf16 %v1852, %v1851
    %v1861 = vld [vmem:[%s17] sm:$0xf]
    %v1862 = vld [vmem:[%s17 + $0x4] sm:$0xf]
    %v1863 = vld [vmem:[%s17 + $0x8] sm:$0xf]
    %v1864 = vld [vmem:[%s17 + $0xc] sm:$0xf]
    %v1865 = vld [vmem:[%s18] sm:$0x1]
    %v1867 = vlaneseq
    %v1868 = vshrl.u32 %v1867, 7
    %v1869 = vsub.s32 0, %v1868
    %v1870 = vrot.slane %v1865, %v1869
    %v1876 = vunpack.c.l.b16 %v1861
    %v1877 = vunpack.c.l.b16 %v1862
    %v1878 = vunpack.c.l.b16 %v1863
    %v1879 = vunpack.c.l.b16 %v1864
    %v1880 = vpack.c.b16 %v1877, %v1876
    %v1881 = vpack.c.b16 %v1879, %v1878
    %v1885 = vsel %vm1177, %v1853, 0
    %v1888 = vsel %vm1177, %v1854, 0
    %v1891 = vsel %vm1177, %v1855, 0
    %v1894 = vsel %vm1177, %v1856, 0
    %v1897 = vsel %vm1177, %v1857, 0
    %v1900 = vsel %vm1177, %v1858, 0
    %v1903 = vsel %vm1177, %v1859, 0
    %v1906 = vsel %vm1177, %v1860, 0
    %1908 = vmatprep.subr.bf16.mxu0 0
    %1909 = vmatpush1.bf16.msra.mxu0 0
    %1910 = vmatprep.subr.bf16.mxu0 0
    %1911 = vmatpush1.bf16.msra.mxu0 0
    %1912 = vmatprep.subr.bf16.mxu0 0
    %1913 = vmatpush1.bf16.msra.mxu0 0
    %1914 = vmatprep.subr.bf16.mxu0 0
    %1915 = vmatpush1.bf16.msra.mxu0 0
    %1916 = vmatprep.subr.bf16.mxu0 0
    %1917 = vmatpush1.bf16.msra.mxu0 0
    %1918 = vmatprep.subr.bf16.mxu0 0
    %1919 = vmatpush1.bf16.msra.mxu0 0
    %1920 = vmatprep.subr.bf16.mxu0 0
    %1921 = vmatpush1.bf16.msra.mxu0 %v1881
    %1922 = vmatprep.subr.bf16.mxu0 0
    %1923 = vmatpush1.bf16.msra.mxu0 %v1880
    %1924 = vmatprep.subr.bf16.mxu0 0
    %1925 = vmatpush2.bf16.msra.mxu0 0
    %1926 = vmatprep.subr.bf16.mxu0 0
    %1927 = vmatpush2.bf16.msra.mxu0 0
    %1928 = vmatprep.subr.bf16.mxu0 0
    %1929 = vmatpush2.bf16.msra.mxu0 0
    %1930 = vmatprep.subr.bf16.mxu0 0
    %1931 = vmatpush2.bf16.msra.mxu0 0
    %1932 = vmatprep.subr.bf16.mxu0 0
    %1933 = vmatpush2.bf16.msra.mxu0 0
    %1934 = vmatprep.subr.bf16.mxu0 0
    %1935 = vmatpush2.bf16.msra.mxu0 0
    %1936 = vmatprep.subr.bf16.mxu0 0
    %1937 = vmatpush2.bf16.msra.mxu0 0
    %1938 = vmatprep.subr.bf16.mxu0 0
    %1939 = vmatpush2.bf16.msra.mxu0 0
    %1940 = vmatprep.mubr.bf16.mxu0 0
    %1941 = vmatmul.mubr.bf16.gmra.mxu0 %v1885
    %v1942 = vpop.f32.mrf.mxu0
    %v1943 = vadd.f32 %v1870, %v1942
    %v1944 = vpop.f32.mrf.mxu0
    %v1945 = vpop.f32.mrf.mxu0
    %v1946 = vadd.f32 %v1870, %v1945
    %v1947 = vpop.f32.mrf.mxu0
    %1948 = vmatprep.mubr.bf16.mxu0 0
    %1949 = vmatmul.mubr.bf16.gmra.mxu0 %v1888
    %v1950 = vpop.f32.mrf.mxu0
    %v1951 = vadd.f32 %v1870, %v1950
    %v1952 = vpop.f32.mrf.mxu0
    %v1953 = vpop.f32.mrf.mxu0
    %v1954 = vadd.f32 %v1870, %v1953
    %v1955 = vpop.f32.mrf.mxu0
    %1956 = vmatprep.mubr.bf16.mxu0 0
    %1957 = vmatmul.mubr.bf16.gmra.mxu0 %v1891
    %v1958 = vpop.f32.mrf.mxu0
    %v1959 = vadd.f32 %v1870, %v1958
    %v1960 = vpop.f32.mrf.mxu0
    %v1961 = vpop.f32.mrf.mxu0
    %v1962 = vadd.f32 %v1870, %v1961
    %v1963 = vpop.f32.mrf.mxu0
    %1964 = vmatprep.mubr.bf16.mxu0 0
    %1965 = vmatmul.mubr.bf16.gmra.mxu0 %v1894
    %v1966 = vpop.f32.mrf.mxu0
    %v1967 = vadd.f32 %v1870, %v1966
    %v1968 = vpop.f32.mrf.mxu0
    %v1969 = vpop.f32.mrf.mxu0
    %v1970 = vadd.f32 %v1870, %v1969
    %v1971 = vpop.f32.mrf.mxu0
    %1972 = vmatprep.mubr.bf16.mxu0 0
    %1973 = vmatmul.mubr.bf16.gmra.mxu0 %v1897
    %v1974 = vpop.f32.mrf.mxu0
    %v1975 = vadd.f32 %v1870, %v1974
    %v1976 = vpop.f32.mrf.mxu0
    %v1977 = vpop.f32.mrf.mxu0
    %v1978 = vadd.f32 %v1870, %v1977
    %v1979 = vpop.f32.mrf.mxu0
    %1980 = vmatprep.mubr.bf16.mxu0 0
    %1981 = vmatmul.mubr.bf16.gmra.mxu0 %v1900
    %v1982 = vpop.f32.mrf.mxu0
    %v1983 = vadd.f32 %v1870, %v1982
    %v1984 = vpop.f32.mrf.mxu0
    %v1985 = vpop.f32.mrf.mxu0
    %v1986 = vadd.f32 %v1870, %v1985
    %v1987 = vpop.f32.mrf.mxu0
    %1988 = vmatprep.mubr.bf16.mxu0 0
    %1989 = vmatmul.mubr.bf16.gmra.mxu0 %v1903
    %v1990 = vpop.f32.mrf.mxu0
    %v1991 = vadd.f32 %v1870, %v1990
    %v1992 = vpop.f32.mrf.mxu0
    %v1993 = vpop.f32.mrf.mxu0
    %v1994 = vadd.f32 %v1870, %v1993
    %v1995 = vpop.f32.mrf.mxu0
    %1996 = vmatprep.mubr.bf16.mxu0 0
    %1997 = vmatmul.mubr.bf16.gmra.mxu0 %v1906
    %v1998 = vpop.f32.mrf.mxu0
    %v1999 = vadd.f32 %v1870, %v1998
    %v2000 = vpop.f32.mrf.mxu0
    %v2001 = vpop.f32.mrf.mxu0
    %v2002 = vadd.f32 %v1870, %v2001
    %v2003 = vpop.f32.mrf.mxu0
    %2004 = vdwg.mxu0
    %vm2005 = vcmask 39936
    %v2006 = vsel %vm2005, %v1943, -inf
    %2007 = vmax.xlane.f32.xlu0 %v2006
    %v2008 = vpop.xlane.xlu0 %2007
    %v2009 = vsel %vm2005, %v1946, -inf
    %2010 = vmax.xlane.f32.xlu0 %v2009
    %v2011 = vpop.xlane.xlu0 %2010
    %v2012 = vsel %vm2005, %v1951, -inf
    %2013 = vmax.xlane.f32.xlu0 %v2012
    %v2014 = vpop.xlane.xlu0 %2013
    %v2015 = vsel %vm2005, %v1954, -inf
    %2016 = vmax.xlane.f32.xlu0 %v2015
    %v2017 = vpop.xlane.xlu0 %2016
    %v2018 = vsel %vm2005, %v1959, -inf
    %2019 = vmax.xlane.f32.xlu0 %v2018
    %v2020 = vpop.xlane.xlu0 %2019
    %v2021 = vsel %vm2005, %v1962, -inf
    %2022 = vmax.xlane.f32.xlu0 %v2021
    %v2023 = vpop.xlane.xlu0 %2022
    %v2024 = vsel %vm2005, %v1967, -inf
    %2025 = vmax.xlane.f32.xlu0 %v2024
    %v2026 = vpop.xlane.xlu0 %2025
    %v2027 = vsel %vm2005, %v1970, -inf
    %2028 = vmax.xlane.f32.xlu0 %v2027
    %v2029 = vpop.xlane.xlu0 %2028
    %v2030 = vsel %vm2005, %v1975, -inf
    %2031 = vmax.xlane.f32.xlu0 %v2030
    %v2032 = vpop.xlane.xlu0 %2031
    %v2033 = vsel %vm2005, %v1978, -inf
    %2034 = vmax.xlane.f32.xlu0 %v2033
    %v2035 = vpop.xlane.xlu0 %2034
    %v2036 = vsel %vm2005, %v1983, -inf
    %2037 = vmax.xlane.f32.xlu0 %v2036
    %v2038 = vpop.xlane.xlu0 %2037
    %v2039 = vsel %vm2005, %v1986, -inf
    %2040 = vmax.xlane.f32.xlu0 %v2039
    %v2041 = vpop.xlane.xlu0 %2040
    %v2042 = vsel %vm2005, %v1991, -inf
    %2043 = vmax.xlane.f32.xlu0 %v2042
    %v2044 = vpop.xlane.xlu0 %2043
    %v2045 = vsel %vm2005, %v1994, -inf
    %2046 = vmax.xlane.f32.xlu0 %v2045
    %v2047 = vpop.xlane.xlu0 %2046
    %v2048 = vsel %vm2005, %v1999, -inf
    %2049 = vmax.xlane.f32.xlu0 %v2048
    %v2050 = vpop.xlane.xlu0 %2049
    %v2051 = vsel %vm2005, %v2002, -inf
    %2052 = vmax.xlane.f32.xlu0 %v2051
    %v2053 = vpop.xlane.xlu0 %2052
    %v2054 = vlaneseq
    %v2055 = vand.u32 %v2054, 127
    %v2056 = vcvt.s32.f32 %v2055
    %vm2057 = vcmp.eq.f32.partialorder %v1943, %v2008
    %vm2058 = vcmp.eq.f32.partialorder %v1946, %v2011
    %vm2059 = vcmp.eq.f32.partialorder %v1951, %v2014
    %vm2060 = vcmp.eq.f32.partialorder %v1954, %v2017
    %vm2061 = vcmp.eq.f32.partialorder %v1959, %v2020
    %vm2062 = vcmp.eq.f32.partialorder %v1962, %v2023
    %vm2063 = vcmp.eq.f32.partialorder %v1967, %v2026
    %vm2064 = vcmp.eq.f32.partialorder %v1970, %v2029
    %vm2065 = vcmp.eq.f32.partialorder %v1975, %v2032
    %vm2066 = vcmp.eq.f32.partialorder %v1978, %v2035
    %vm2067 = vcmp.eq.f32.partialorder %v1983, %v2038
    %vm2068 = vcmp.eq.f32.partialorder %v1986, %v2041
    %vm2069 = vcmp.eq.f32.partialorder %v1991, %v2044
    %vm2070 = vcmp.eq.f32.partialorder %v1994, %v2047
    %vm2071 = vcmp.eq.f32.partialorder %v1999, %v2050
    %vm2072 = vcmp.eq.f32.partialorder %v2002, %v2053
    %v2073 = vsel %vm2057, %v2056, 5.0
    %v2074 = vsel %vm2058, %v2056, 5.0
    %v2075 = vsel %vm2059, %v2056, 5.0
    %v2076 = vsel %vm2060, %v2056, 5.0
    %v2077 = vsel %vm2061, %v2056, 5.0
    %v2078 = vsel %vm2062, %v2056, 5.0
    %v2079 = vsel %vm2063, %v2056, 5.0
    %v2080 = vsel %vm2064, %v2056, 5.0
    %v2081 = vsel %vm2065, %v2056, 5.0
    %v2082 = vsel %vm2066, %v2056, 5.0
    %v2083 = vsel %vm2067, %v2056, 5.0
    %v2084 = vsel %vm2068, %v2056, 5.0
    %v2085 = vsel %vm2069, %v2056, 5.0
    %v2086 = vsel %vm2070, %v2056, 5.0
    %v2087 = vsel %vm2071, %v2056, 5.0
    %v2088 = vsel %vm2072, %v2056, 5.0
    %v2089 = vsel %vm2005, %v2073, inf
    %2090 = vmin.xlane.f32.xlu0 %v2089
    %v2091 = vpop.xlane.xlu0 %2090
    %v2092 = vsel %vm2005, %v2074, inf
    %2093 = vmin.xlane.f32.xlu0 %v2092
    %v2094 = vpop.xlane.xlu0 %2093
    %v2095 = vsel %vm2005, %v2075, inf
    %2096 = vmin.xlane.f32.xlu0 %v2095
    %v2097 = vpop.xlane.xlu0 %2096
    %v2098 = vsel %vm2005, %v2076, inf
    %2099 = vmin.xlane.f32.xlu0 %v2098
    %v2100 = vpop.xlane.xlu0 %2099
    %v2101 = vsel %vm2005, %v2077, inf
    %2102 = vmin.xlane.f32.xlu0 %v2101
    %v2103 = vpop.xlane.xlu0 %2102
    %v2104 = vsel %vm2005, %v2078, inf
    %2105 = vmin.xlane.f32.xlu0 %v2104
    %v2106 = vpop.xlane.xlu0 %2105
    %v2107 = vsel %vm2005, %v2079, inf
    %2108 = vmin.xlane.f32.xlu0 %v2107
    %v2109 = vpop.xlane.xlu0 %2108
    %v2110 = vsel %vm2005, %v2080, inf
    %2111 = vmin.xlane.f32.xlu0 %v2110
    %v2112 = vpop.xlane.xlu0 %2111
    %v2113 = vsel %vm2005, %v2081, inf
    %2114 = vmin.xlane.f32.xlu0 %v2113
    %v2115 = vpop.xlane.xlu0 %2114
    %v2116 = vsel %vm2005, %v2082, inf
    %2117 = vmin.xlane.f32.xlu0 %v2116
    %v2118 = vpop.xlane.xlu0 %2117
    %v2119 = vsel %vm2005, %v2083, inf
    %2120 = vmin.xlane.f32.xlu0 %v2119
    %v2121 = vpop.xlane.xlu0 %2120
    %v2122 = vsel %vm2005, %v2084, inf
    %2123 = vmin.xlane.f32.xlu0 %v2122
    %v2124 = vpop.xlane.xlu0 %2123
    %v2125 = vsel %vm2005, %v2085, inf
    %2126 = vmin.xlane.f32.xlu0 %v2125
    %v2127 = vpop.xlane.xlu0 %2126
    %v2128 = vsel %vm2005, %v2086, inf
    %2129 = vmin.xlane.f32.xlu0 %v2128
    %v2130 = vpop.xlane.xlu0 %2129
    %v2131 = vsel %vm2005, %v2087, inf
    %2132 = vmin.xlane.f32.xlu0 %v2131
    %v2133 = vpop.xlane.xlu0 %2132
    %v2134 = vsel %vm2005, %v2088, inf
    %2135 = vmin.xlane.f32.xlu0 %v2134
    %v2136 = vpop.xlane.xlu0 %2135
    %v2137 = vsub.f32 %v1943, %v2008
    %v2138 = vsub.f32 %v1946, %v2011
    %v2139 = vsub.f32 %v1951, %v2014
    %v2140 = vsub.f32 %v1954, %v2017
    %v2141 = vsub.f32 %v1959, %v2020
    %v2142 = vsub.f32 %v1962, %v2023
    %v2143 = vsub.f32 %v1967, %v2026
    %v2144 = vsub.f32 %v1970, %v2029
    %v2145 = vsub.f32 %v1975, %v2032
    %v2146 = vsub.f32 %v1978, %v2035
    %v2147 = vsub.f32 %v1983, %v2038
    %v2148 = vsub.f32 %v1986, %v2041
    %v2149 = vsub.f32 %v1991, %v2044
    %v2150 = vsub.f32 %v1994, %v2047
    %v2151 = vsub.f32 %v1999, %v2050
    %v2152 = vsub.f32 %v2002, %v2053
    %v2153 = vmul.f32 %v2137, 1.442695
    %v2154 = vpow.pop %v2153
    %v2155 = vmul.f32 %v2138, 1.442695
    %v2156 = vpow.pop %v2155
    %v2157 = vmul.f32 %v2139, 1.442695
    %v2158 = vpow.pop %v2157
    %v2159 = vmul.f32 %v2140, 1.442695
    %v2160 = vpow.pop %v2159
    %v2161 = vmul.f32 %v2141, 1.442695
    %v2162 = vpow.pop %v2161
    %v2163 = vmul.f32 %v2142, 1.442695
    %v2164 = vpow.pop %v2163
    %v2165 = vmul.f32 %v2143, 1.442695
    %v2166 = vpow.pop %v2165
    %v2167 = vmul.f32 %v2144, 1.442695
    %v2168 = vpow.pop %v2167
    %v2169 = vmul.f32 %v2145, 1.442695
    %v2170 = vpow.pop %v2169
    %v2171 = vmul.f32 %v2146, 1.442695
    %v2172 = vpow.pop %v2171
    %v2173 = vmul.f32 %v2147, 1.442695
    %v2174 = vpow.pop %v2173
    %v2175 = vmul.f32 %v2148, 1.442695
    %v2176 = vpow.pop %v2175
    %v2177 = vmul.f32 %v2149, 1.442695
    %v2178 = vpow.pop %v2177
    %v2179 = vmul.f32 %v2150, 1.442695
    %v2180 = vpow.pop %v2179
    %v2181 = vmul.f32 %v2151, 1.442695
    %v2182 = vpow.pop %v2181
    %v2183 = vmul.f32 %v2152, 1.442695
    %v2184 = vpow.pop %v2183
    %v2185 = vsel %vm2005, %v2154, 0.0
    %2186 = vadd.xlane.f32.xlu0 %v2185
    %v2187 = vpop.xlane.xlu0 %2186
    %v2188 = vsel %vm2005, %v2156, 0.0
    %2189 = vadd.xlane.f32.xlu0 %v2188
    %v2190 = vpop.xlane.xlu0 %2189
    %v2191 = vsel %vm2005, %v2158, 0.0
    %2192 = vadd.xlane.f32.xlu0 %v2191
    %v2193 = vpop.xlane.xlu0 %2192
    %v2194 = vsel %vm2005, %v2160, 0.0
    %2195 = vadd.xlane.f32.xlu0 %v2194
    %v2196 = vpop.xlane.xlu0 %2195
    %v2197 = vsel %vm2005, %v2162, 0.0
    %2198 = vadd.xlane.f32.xlu0 %v2197
    %v2199 = vpop.xlane.xlu0 %2198
    %v2200 = vsel %vm2005, %v2164, 0.0
    %2201 = vadd.xlane.f32.xlu0 %v2200
    %v2202 = vpop.xlane.xlu0 %2201
    %v2203 = vsel %vm2005, %v2166, 0.0
    %2204 = vadd.xlane.f32.xlu0 %v2203
    %v2205 = vpop.xlane.xlu0 %2204
    %v2206 = vsel %vm2005, %v2168, 0.0
    %2207 = vadd.xlane.f32.xlu0 %v2206
    %v2208 = vpop.xlane.xlu0 %2207
    %v2209 = vsel %vm2005, %v2170, 0.0
    %2210 = vadd.xlane.f32.xlu0 %v2209
    %v2211 = vpop.xlane.xlu0 %2210
    %v2212 = vsel %vm2005, %v2172, 0.0
    %2213 = vadd.xlane.f32.xlu0 %v2212
    %v2214 = vpop.xlane.xlu0 %2213
    %v2215 = vsel %vm2005, %v2174, 0.0
    %2216 = vadd.xlane.f32.xlu0 %v2215
    %v2217 = vpop.xlane.xlu0 %2216
    %v2218 = vsel %vm2005, %v2176, 0.0
    %2219 = vadd.xlane.f32.xlu0 %v2218
    %v2220 = vpop.xlane.xlu0 %2219
    %v2221 = vsel %vm2005, %v2178, 0.0
    %2222 = vadd.xlane.f32.xlu0 %v2221
    %v2223 = vpop.xlane.xlu0 %2222
    %v2224 = vsel %vm2005, %v2180, 0.0
    %2225 = vadd.xlane.f32.xlu0 %v2224
    %v2226 = vpop.xlane.xlu0 %2225
    %v2227 = vsel %vm2005, %v2182, 0.0
    %2228 = vadd.xlane.f32.xlu0 %v2227
    %v2229 = vpop.xlane.xlu0 %2228
    %v2230 = vsel %vm2005, %v2184, 0.0
    %2231 = vadd.xlane.f32.xlu0 %v2230
    %v2232 = vpop.xlane.xlu0 %2231
    %v2233 = vlog2.pop %v2187
    %v2234 = vmul.f32 %v2233, 0.6931472
    %v2235 = vlog2.pop %v2190
    %v2236 = vmul.f32 %v2235, 0.6931472
    %v2237 = vlog2.pop %v2193
    %v2238 = vmul.f32 %v2237, 0.6931472
    %v2239 = vlog2.pop %v2196
    %v2240 = vmul.f32 %v2239, 0.6931472
    %v2241 = vlog2.pop %v2199
    %v2242 = vmul.f32 %v2241, 0.6931472
    %v2243 = vlog2.pop %v2202
    %v2244 = vmul.f32 %v2243, 0.6931472
    %v2245 = vlog2.pop %v2205
    %v2246 = vmul.f32 %v2245, 0.6931472
    %v2247 = vlog2.pop %v2208
    %v2248 = vmul.f32 %v2247, 0.6931472
    %v2249 = vlog2.pop %v2211
    %v2250 = vmul.f32 %v2249, 0.6931472
    %v2251 = vlog2.pop %v2214
    %v2252 = vmul.f32 %v2251, 0.6931472
    %v2253 = vlog2.pop %v2217
    %v2254 = vmul.f32 %v2253, 0.6931472
    %v2255 = vlog2.pop %v2220
    %v2256 = vmul.f32 %v2255, 0.6931472
    %v2257 = vlog2.pop %v2223
    %v2258 = vmul.f32 %v2257, 0.6931472
    %v2259 = vlog2.pop %v2226
    %v2260 = vmul.f32 %v2259, 0.6931472
    %v2261 = vlog2.pop %v2229
    %v2262 = vmul.f32 %v2261, 0.6931472
    %v2263 = vlog2.pop %v2232
    %v2264 = vmul.f32 %v2263, 0.6931472
    %v2265 = vsub.f32 0.0, %v2234
    %v2266 = vsub.f32 0.0, %v2236
    %v2267 = vsub.f32 0.0, %v2238
    %v2268 = vsub.f32 0.0, %v2240
    %v2269 = vsub.f32 0.0, %v2242
    %v2270 = vsub.f32 0.0, %v2244
    %v2271 = vsub.f32 0.0, %v2246
    %v2272 = vsub.f32 0.0, %v2248
    %v2273 = vsub.f32 0.0, %v2250
    %v2274 = vsub.f32 0.0, %v2252
    %v2275 = vsub.f32 0.0, %v2254
    %v2276 = vsub.f32 0.0, %v2256
    %v2277 = vsub.f32 0.0, %v2258
    %v2278 = vsub.f32 0.0, %v2260
    %v2279 = vsub.f32 0.0, %v2262
    %v2280 = vsub.f32 0.0, %v2264
    %v2281 = vcvt.f32.s32.to.zero.pseudo %v2091
    %v2282 = vcvt.f32.s32.to.zero.pseudo %v2094
    %v2283 = vcvt.f32.s32.to.zero.pseudo %v2097
    %v2284 = vcvt.f32.s32.to.zero.pseudo %v2100
    %v2285 = vcvt.f32.s32.to.zero.pseudo %v2103
    %v2286 = vcvt.f32.s32.to.zero.pseudo %v2106
    %v2287 = vcvt.f32.s32.to.zero.pseudo %v2109
    %v2288 = vcvt.f32.s32.to.zero.pseudo %v2112
    %v2289 = vcvt.f32.s32.to.zero.pseudo %v2115
    %v2290 = vcvt.f32.s32.to.zero.pseudo %v2118
    %v2291 = vcvt.f32.s32.to.zero.pseudo %v2121
    %v2292 = vcvt.f32.s32.to.zero.pseudo %v2124
    %v2293 = vcvt.f32.s32.to.zero.pseudo %v2127
    %v2294 = vcvt.f32.s32.to.zero.pseudo %v2130
    %v2295 = vcvt.f32.s32.to.zero.pseudo %v2133
    %v2296 = vcvt.f32.s32.to.zero.pseudo %v2136
    %v2297 = vlaneseq
    %v2298 = vshrl.u32 %v2297, 7
    %v2299 = vsub.s32 %v2055, %v2298
    %v2300 = vrot.slane %v2281, %v2299
    %v2301 = vadd.s32 %v2055, 4294967288
    %v2302 = vlaneseq
    %v2303 = vshrl.u32 %v2302, 7
    %v2304 = vsub.s32 %v2301, %v2303
    %v2305 = vrot.slane %v2282, %v2304
    %vm2306 = vcmask 130112
    %v2307 = vsel %vm2306, %v2305, %v2300
    %v2308 = vadd.s32 %v2055, 4294967280
    %v2309 = vlaneseq
    %v2310 = vshrl.u32 %v2309, 7
    %v2311 = vsub.s32 %v2308, %v2310
    %v2312 = vrot.slane %v2283, %v2311
    %vm2313 = vcmask 195712
    %v2314 = vsel %vm2313, %v2312, %v2307
    %v2315 = vadd.s32 %v2055, 4294967272
    %v2316 = vlaneseq
    %v2317 = vshrl.u32 %v2316, 7
    %v2318 = vsub.s32 %v2315, %v2317
    %v2319 = vrot.slane %v2284, %v2318
    %vm2320 = vcmask 261312
    %v2321 = vsel %vm2320, %v2319, %v2314
    %v2322 = vadd.s32 %v2055, 4294967264
    %v2323 = vlaneseq
    %v2324 = vshrl.u32 %v2323, 7
    %v2325 = vsub.s32 %v2322, %v2324
    %v2326 = vrot.slane %v2285, %v2325
    %vm2327 = vcmask 326912
    %v2328 = vsel %vm2327, %v2326, %v2321
    %v2329 = vadd.s32 %v2055, 4294967256
    %v2330 = vlaneseq
    %v2331 = vshrl.u32 %v2330, 7
    %v2332 = vsub.s32 %v2329, %v2331
    %v2333 = vrot.slane %v2286, %v2332
    %vm2334 = vcmask 392512
    %v2335 = vsel %vm2334, %v2333, %v2328
    %v2336 = vadd.s32 %v2055, 4294967248
    %v2337 = vlaneseq
    %v2338 = vshrl.u32 %v2337, 7
    %v2339 = vsub.s32 %v2336, %v2338
    %v2340 = vrot.slane %v2287, %v2339
    %vm2341 = vcmask 458112
    %v2342 = vsel %vm2341, %v2340, %v2335
    %v2343 = vadd.s32 %v2055, 4294967240
    %v2344 = vlaneseq
    %v2345 = vshrl.u32 %v2344, 7
    %v2346 = vsub.s32 %v2343, %v2345
    %v2347 = vrot.slane %v2288, %v2346
    %vm2348 = vcmask 523712
    %v2349 = vsel %vm2348, %v2347, %v2342
    %v2350 = vadd.s32 %v2055, 4294967232
    %v2351 = vlaneseq
    %v2352 = vshrl.u32 %v2351, 7
    %v2353 = vsub.s32 %v2350, %v2352
    %v2354 = vrot.slane %v2289, %v2353
    %vm2355 = vcmask 589312
    %v2356 = vsel %vm2355, %v2354, %v2349
    %v2357 = vadd.s32 %v2055, 4294967224
    %v2358 = vlaneseq
    %v2359 = vshrl.u32 %v2358, 7
    %v2360 = vsub.s32 %v2357, %v2359
    %v2361 = vrot.slane %v2290, %v2360
    %vm2362 = vcmask 654912
    %v2363 = vsel %vm2362, %v2361, %v2356
    %v2364 = vadd.s32 %v2055, 4294967216
    %v2365 = vlaneseq
    %v2366 = vshrl.u32 %v2365, 7
    %v2367 = vsub.s32 %v2364, %v2366
    %v2368 = vrot.slane %v2291, %v2367
    %vm2369 = vcmask 720512
    %v2370 = vsel %vm2369, %v2368, %v2363
    %v2371 = vadd.s32 %v2055, 4294967208
    %v2372 = vlaneseq
    %v2373 = vshrl.u32 %v2372, 7
    %v2374 = vsub.s32 %v2371, %v2373
    %v2375 = vrot.slane %v2292, %v2374
    %vm2376 = vcmask 786112
    %v2377 = vsel %vm2376, %v2375, %v2370
    %v2378 = vadd.s32 %v2055, 4294967200
    %v2379 = vlaneseq
    %v2380 = vshrl.u32 %v2379, 7
    %v2381 = vsub.s32 %v2378, %v2380
    %v2382 = vrot.slane %v2293, %v2381
    %vm2383 = vcmask 851712
    %v2384 = vsel %vm2383, %v2382, %v2377
    %v2385 = vadd.s32 %v2055, 4294967192
    %v2386 = vlaneseq
    %v2387 = vshrl.u32 %v2386, 7
    %v2388 = vsub.s32 %v2385, %v2387
    %v2389 = vrot.slane %v2294, %v2388
    %vm2390 = vcmask 917312
    %v2391 = vsel %vm2390, %v2389, %v2384
    %v2392 = vadd.s32 %v2055, 4294967184
    %v2393 = vlaneseq
    %v2394 = vshrl.u32 %v2393, 7
    %v2395 = vsub.s32 %v2392, %v2394
    %v2396 = vrot.slane %v2295, %v2395
    %vm2397 = vcmask 982912
    %v2398 = vsel %vm2397, %v2396, %v2391
    %v2399 = vadd.s32 %v2055, 4294967176
    %v2400 = vlaneseq
    %v2401 = vshrl.u32 %v2400, 7
    %v2402 = vsub.s32 %v2399, %v2401
    %v2403 = vrot.slane %v2296, %v2402
    %vm2404 = vcmask 1048512
    %v2405 = vsel %vm2404, %v2403, %v2398
    %2406 = vst [vmem:[#allocation2] sm:$0x1] %v2405
    %v2423 = vlaneseq
    %v2424 = vshrl.u32 %v2423, 7
    %v2425 = vsub.s32 %v2055, %v2424
    %v2426 = vrot.slane %v2265, %v2425
    %v2427 = vlaneseq
    %v2428 = vshrl.u32 %v2427, 7
    %v2429 = vsub.s32 %v2301, %v2428
    %v2430 = vrot.slane %v2266, %v2429
    %v2431 = vsel %vm2306, %v2430, %v2426
    %v2432 = vlaneseq
    %v2433 = vshrl.u32 %v2432, 7
    %v2434 = vsub.s32 %v2308, %v2433
    %v2435 = vrot.slane %v2267, %v2434
    %v2436 = vsel %vm2313, %v2435, %v2431
    %v2437 = vlaneseq
    %v2438 = vshrl.u32 %v2437, 7
    %v2439 = vsub.s32 %v2315, %v2438
    %v2440 = vrot.slane %v2268, %v2439
    %v2441 = vsel %vm2320, %v2440, %v2436
    %v2442 = vlaneseq
    %v2443 = vshrl.u32 %v2442, 7
    %v2444 = vsub.s32 %v2322, %v2443
    %v2445 = vrot.slane %v2269, %v2444
    %v2446 = vsel %vm2327, %v2445, %v2441
    %v2447 = vlaneseq
    %v2448 = vshrl.u32 %v2447, 7
    %v2449 = vsub.s32 %v2329, %v2448
    %v2450 = vrot.slane %v2270, %v2449
    %v2451 = vsel %vm2334, %v2450, %v2446
    %v2452 = vlaneseq
    %v2453 = vshrl.u32 %v2452, 7
    %v2454 = vsub.s32 %v2336, %v2453
    %v2455 = vrot.slane %v2271, %v2454
    %v2456 = vsel %vm2341, %v2455, %v2451
    %v2457 = vlaneseq
    %v2458 = vshrl.u32 %v2457, 7
    %v2459 = vsub.s32 %v2343, %v2458
    %v2460 = vrot.slane %v2272, %v2459
    %v2461 = vsel %vm2348, %v2460, %v2456
    %v2462 = vlaneseq
    %v2463 = vshrl.u32 %v2462, 7
    %v2464 = vsub.s32 %v2350, %v2463
    %v2465 = vrot.slane %v2273, %v2464
    %v2466 = vsel %vm2355, %v2465, %v2461
    %v2467 = vlaneseq
    %v2468 = vshrl.u32 %v2467, 7
    %v2469 = vsub.s32 %v2357, %v2468
    %v2470 = vrot.slane %v2274, %v2469
    %v2471 = vsel %vm2362, %v2470, %v2466
    %v2472 = vlaneseq
    %v2473 = vshrl.u32 %v2472, 7
    %v2474 = vsub.s32 %v2364, %v2473
    %v2475 = vrot.slane %v2275, %v2474
    %v2476 = vsel %vm2369, %v2475, %v2471
    %v2477 = vlaneseq
    %v2478 = vshrl.u32 %v2477, 7
    %v2479 = vsub.s32 %v2371, %v2478
    %v2480 = vrot.slane %v2276, %v2479
    %v2481 = vsel %vm2376, %v2480, %v2476
    %v2482 = vlaneseq
    %v2483 = vshrl.u32 %v2482, 7
    %v2484 = vsub.s32 %v2378, %v2483
    %v2485 = vrot.slane %v2277, %v2484
    %v2486 = vsel %vm2383, %v2485, %v2481
    %v2487 = vlaneseq
    %v2488 = vshrl.u32 %v2487, 7
    %v2489 = vsub.s32 %v2385, %v2488
    %v2490 = vrot.slane %v2278, %v2489
    %v2491 = vsel %vm2390, %v2490, %v2486
    %v2492 = vlaneseq
    %v2493 = vshrl.u32 %v2492, 7
    %v2494 = vsub.s32 %v2392, %v2493
    %v2495 = vrot.slane %v2279, %v2494
    %v2496 = vsel %vm2397, %v2495, %v2491
    %v2497 = vlaneseq
    %v2498 = vshrl.u32 %v2497, 7
    %v2499 = vsub.s32 %v2399, %v2498
    %v2500 = vrot.slane %v2280, %v2499
    %v2501 = vsel %vm2404, %v2500, %v2496
    %2503 = vst [vmem:[#allocation4] sm:$0x1] %v2501
    // Predicated region
    $region78: #{tpu_custom_call.1} parent=1 // pred_check
      _
    $region79: #{tpu_custom_call.1} parent=1 // pred_check_branch
      %2505 = sbr.rel (0) target = $region81
    $region80: #{tpu_custom_call.1} parent=1 // pred_region
      %s2507 = ssub.s32 16, 16
      %2508 = vsyncadd [#allocation3], %s2507
      %s2510 = sshll.u32 [#allocation2], 4
      %s2511 = int_to_ptr.vmem [resolvable:$true] %s2510
      %2513 = dma.vmem_to_hbm [thread:$0]  %s2511, 16, %s19, [#allocation3]
    $region81: #{tpu_custom_call.1} parent=1 // pred_fallthru
      _
    // Predicated region
    $region82: #{tpu_custom_call.1} parent=1 // pred_check
      _
    $region83: #{tpu_custom_call.1} parent=1 // pred_check_branch
      %2515 = sbr.rel (0) target = $region85
    $region84: #{tpu_custom_call.1} parent=1 // pred_region
      %s2517 = ssub.s32 16, 16
      %2518 = vsyncadd [#allocation5], %s2517
      %s2520 = sshll.u32 [#allocation4], 4
      %s2521 = int_to_ptr.vmem [resolvable:$true] %s2520
      %2523 = dma.vmem_to_hbm [thread:$0]  %s2521, 16, %s20, [#allocation5]
    $region85: #{tpu_custom_call.1} parent=1 // pred_fallthru
      _
    // Predicated region
    $region86: #{tpu_custom_call.1} parent=1 // pred_check
      _
    $region87: #{tpu_custom_call.1} parent=1 // pred_check_branch
      %2525 = sbr.rel (0) target = $region89
    $region88: #{tpu_custom_call.1} parent=1 // pred_region
      %2526 = dma.done [#allocation3], 16
    $region89: #{tpu_custom_call.1} parent=1 // pred_fallthru
      _
    // Predicated region
    $region90: #{tpu_custom_call.1} parent=1 // pred_check
      _
    $region91: #{tpu_custom_call.1} parent=1 // pred_check_branch
      %2528 = sbr.rel (0) target = $region93
    $region92: #{tpu_custom_call.1} parent=1 // pred_region
      %2529 = dma.done [#allocation5], 16
    $region93: #{tpu_custom_call.1} parent=1 // pred_fallthru
      _
    %2530 = vsyncpa [#allocation3], 1
    %2531 = vsyncpa [#allocation5], 1

</llo_original>
